<compile_context>
chip_gen: v7x
topology: tpu7x:2x2x1
jax: 0.10.0
libtpu: 0.0.40
codegen_flags: <defaults>
</compile_context>

<pallas_src>
import functools

import jax
import jax.numpy as jnp
from jax.experimental import pallas as pl
from jax.experimental.pallas import tpu as pltpu


# ----------------------------------------------------------------------------
# helpers
# ----------------------------------------------------------------------------
def _round_up(n, m):
    return ((n + m - 1) // m) * m


def _pad2d(a, rows, cols):
    return jnp.pad(a, ((0, rows - a.shape[0]), (0, cols - a.shape[1])))


_VMEM_LIMIT_CACHE = None


def _vmem_limit_bytes():
    """Generation-aware scoped-VMEM budget with headroom under physical VMEM."""
    global _VMEM_LIMIT_CACHE
    if _VMEM_LIMIT_CACHE is None:
        try:
            cap = int(pltpu.get_tpu_info().vmem_capacity_bytes)
        except Exception:
            cap = 64 * 1024 * 1024  # conservative (v7x-sized) fallback
        # ~48 MiB on v7x (64 MiB physical), ~96 MiB on v5e/v6e (128 MiB physical)
        _VMEM_LIMIT_CACHE = int(min((cap * 3) // 4, 100 * 1024 * 1024))
    return _VMEM_LIMIT_CACHE


# ----------------------------------------------------------------------------
# Pallas kernels
# ----------------------------------------------------------------------------
def _rna_decoder_kernel(n_hidden, *refs):
    """RNA (ModalVAEDecoder) forward.

    Grid: (batch tiles [parallel], recons-output tiles [arbitrary]).
    refs = (x, [w_i, b_i]*n_hidden, wr_tile, br_tile, out_tile, h_scratch)
      x        : [TILE_B, d_in_pad]      bf16 (batch-id cols annihilated via zeroed W rows)
      w_i      : [in_pad, hid_pad]       bf16 (BN scale folded)     -- resident
      b_i      : [1, hid_pad]            f32  (bias*scale + shift)  -- resident
      wr_tile  : [hid_last_pad, TILE_N]  bf16
      br_tile  : [1, TILE_N]             f32
      out_tile : [TILE_B, TILE_N]        f32
      h_scratch: [TILE_B, hid_last_pad]  bf16 (persists across the j axis)
    """
    x_ref = refs[0]
    params = refs[1:1 + 2 * n_hidden]
    wr_ref = refs[1 + 2 * n_hidden]
    br_ref = refs[2 + 2 * n_hidden]
    o_ref = refs[3 + 2 * n_hidden]
    h_ref = refs[4 + 2 * n_hidden]

    @pl.when(pl.program_id(1) == 0)
    def _():
        # Hidden stack runs once per batch tile; result reused for every output tile.
        h = x_ref[...]
        for t in range(n_hidden):
            w, b = params[2 * t], params[2 * t + 1]
            a = jnp.dot(h, w[...], preferred_element_type=jnp.float32) + b[...]
            h = jnp.maximum(a, 0.0).astype(jnp.bfloat16)  # ReLU; Dropout = identity (eval)
        h_ref[...] = h

    o_ref[...] = (jnp.dot(h_ref[...], wr_ref[...],
                          preferred_element_type=jnp.float32)
                  + br_ref[...]).astype(o_ref.dtype)


def _atac_decoder_kernel(x_ref, w_ref, o_ref):
    """ATAC (MaskedLinear, bias=False): one [TILE_B, TILE_N] output tile (bf16 store)."""
    o_ref[...] = jnp.dot(x_ref[...], w_ref[...],
                         preferred_element_type=jnp.float32).astype(o_ref.dtype)


# ----------------------------------------------------------------------------
# Wrapper
# ----------------------------------------------------------------------------
class ExplainModelLatentZ:
    """JAX/Pallas equivalent of explainModelLatentZ (eval-mode forward)."""

    def __init__(self, latent_dim, batch_dims, decoder_hidden_dims,
                 rna_dim, atac_dim, mode="rna", dimension_num=None,
                 atac_mask=None, seed=0,
                 max_tile_b=256, rna_tile_n_cap=2048, atac_tile_n_cap=8192):
        self.latent_dim = latent_dim
        self.batch_dims = batch_dims
        self.mode = mode
        self.dimension_num = dimension_num
        self.max_tile_b = max(16, _round_up(max_tile_b, 16))
        self._use_buffered = None  # resolved (with fallback) on first RNA call

        d_in = 2 * latent_dim + batch_dims
        self.d_in = d_in
        self.d_in_pad = _round_up(d_in, 128)
        key = jax.random.PRNGKey(seed)

        def kaiming(k, fan_in, fan_out):
            # kaiming_normal_(nonlinearity='relu'), stored pre-transposed [in, out]
            return jax.random.normal(k, (fan_in, fan_out), jnp.float32) * jnp.sqrt(2.0 / fan_in)

        # column mask over the input: keep [share | private], zero batch_id cols.
        colmask = jnp.concatenate([jnp.ones((2 * latent_dim,), jnp.float32),
                                   jnp.zeros((batch_dims,), jnp.float32)])
        self._colmask = colmask[None, :]

        # ---------------- RNA decoder (ModalVAEDecoder) ----------------
        dims = [d_in] + list(decoder_hidden_dims)
        self._raw_rna = []          # raw params for the f32 semantic reference
        self.rna_hidden = []        # folded, padded, bf16 kernel params
        for i in range(len(decoder_hidden_dims)):
            key, kw = jax.random.split(key)
            w = kaiming(kw, dims[i], dims[i + 1])
            b = jnp.zeros((dims[i + 1],), jnp.float32)
            # BatchNorm1d eval-mode buffers / affine (PyTorch defaults)
            gamma = jnp.ones((dims[i + 1],), jnp.float32)
            beta = jnp.zeros((dims[i + 1],), jnp.float32)
            r_mean = jnp.zeros((dims[i + 1],), jnp.float32)
            r_var = jnp.ones((dims[i + 1],), jnp.float32)
            self._raw_rna.append((w, b, gamma, beta, r_mean, r_var))

            # fold BN into weight/bias:  relu((h@w+b)*s + t) = relu(h@(w*s) + (b*s+t))
            s = gamma / jnp.sqrt(r_var + 1e-5)
            t = beta - r_mean * s
            wf = w * s[None, :]
            bf = b * s + t
            if i == 0:
                wf = wf * colmask[:, None]   # fold batch-id zeroing into layer-0 rows
            in_pad = self.d_in_pad if i == 0 else _round_up(dims[i], 128)
            out_pad = _round_up(dims[i + 1], 128)
            self.rna_hidden.append((
                _pad2d(wf, in_pad, out_pad).astype(jnp.bfloat16),
                _pad2d(bf[None, :], 1, out_pad),
            ))

        key, kw = jax.random.split(key)
        wr = kaiming(kw, dims[-1], rna_dim)
        br = jnp.zeros((rna_dim,), jnp.float32)
        self._raw_wr, self._raw_br = wr, br[None, :]
        if dimension_num is not None and mode == "rna":
            wr = wr[:, dimension_num:dimension_num + 1]
            br = br[dimension_num:dimension_num + 1]
            self.rna_out_dim = 1
        else:
            self.rna_out_dim = rna_dim
        self.rna_tile_n = min(_round_up(self.rna_out_dim, 128),
                              max(128, _round_up(rna_tile_n_cap, 128)))
        self.rna_out_pad = _round_up(self.rna_out_dim, self.rna_tile_n)
        hin_pad = _round_up(dims[-1], 128)
        self.rna_wr = _pad2d(wr, hin_pad, self.rna_out_pad).astype(jnp.bfloat16)
        self.rna_br = _pad2d(br[None, :], 1, self.rna_out_pad)
        self.rna_dim = rna_dim

        # ---------------- ATAC decoder (MaskedLinear, bias=False) ----------------
        key, kw = jax.random.split(key)
        wa = kaiming(kw, d_in, atac_dim)
        if atac_mask is not None:
            # MaskedLinear zeroes masked entries of the first latent_dim input rows at
            # init; the eval-mode forward value is then just x @ W.T.
            wa = wa.at[:latent_dim, :].multiply(atac_mask.astype(jnp.float32))
        self._raw_atac_w = wa
        wa = wa * colmask[:, None]                 # fold batch-id zeroing
        if dimension_num is not None and mode == "atac":
            wa = wa[:, dimension_num:dimension_num + 1]
            self.atac_out_dim = 1
        else:
            self.atac_out_dim = atac_dim
        self.atac_tile_n = min(_round_up(self.atac_out_dim, 128),
                               max(128, _round_up(atac_tile_n_cap, 128)))
        self.atac_out_pad = _round_up(self.atac_out_dim, self.atac_tile_n)
        self.atac_w = _pad2d(wa, self.d_in_pad, self.atac_out_pad).astype(jnp.bfloat16)
        self.atac_dim = atac_dim

    # ------------------------------------------------------------------
    def _pick_tile_b(self, B):
        # multiple of 16 for bf16 sublane packing; >=128 preferred when B allows.
        tile_b = min(_round_up(B, 16), self.max_tile_b)
        # v7x has 2 TensorCores: avoid a size-1 parallel batch axis when splittable.
        if _round_up(B, tile_b) // tile_b < 2 and B >= 64:
            tile_b = _round_up((B + 1) // 2, 16)
        return tile_b

    # ------------------------------------------------------------------
    def _rna_call(self, xp, b_pad, tile_b, use_buffered):
        n_hidden = len(self.rna_hidden)
        flat = []
        for w, b in self.rna_hidden:
            flat += [w, b]
        flat += [self.rna_wr, self.rna_br]

        tn = self.rna_tile_n
        nb = b_pad // tile_b
        nj = self.rna_out_pad // tn
        hlast_pad = self.rna_hidden[-1][0].shape[1]

        # Resident params: constant block index -> no re-DMA; single-buffer them
        # so they don't occupy 2x their size in VMEM.
        resident_kw = {"pipeline_mode": pl.Buffered(1)} if use_buffered else {}

        in_specs = [pl.BlockSpec((tile_b, self.d_in_pad), lambda i, j: (i, 0))]
        for w, b in self.rna_hidden:
            in_specs.append(pl.BlockSpec(w.shape, lambda i, j: (0, 0), **resident_kw))
            in_specs.append(pl.BlockSpec(b.shape, lambda i, j: (0, 0), **resident_kw))
        # Recons weight/bias streamed per output-feature tile (default double-buffered).
        in_specs.append(pl.BlockSpec((hlast_pad, tn), lambda i, j: (0, j)))
        in_specs.append(pl.BlockSpec((1, tn), lambda i, j: (0, j)))
        out_specs = pl.BlockSpec((tile_b, tn), lambda i, j: (i, j))

        layer_dims = [self.d_in_pad] + [w.shape[1] for w, _ in self.rna_hidden]
        hidden_flops = 2 * b_pad * sum(layer_dims[t] * layer_dims[t + 1]
                                       for t in range(n_hidden))
        recons_flops = 2 * b_pad * hlast_pad * self.rna_out_pad
        hidden_bytes = sum(int(w.size) * 2 + int(b.size) * 4 for w, b in self.rna_hidden)
        bytes_acc = (int(xp.size) * 2 + hidden_bytes
                     + nb * (int(self.rna_wr.size) * 2 + int(self.rna_br.size) * 4)
                     + b_pad * self.rna_out_pad * 4)

        return pl.pallas_call(
            functools.partial(_rna_decoder_kernel, n_hidden),
            out_shape=jax.ShapeDtypeStruct((b_pad, self.rna_out_pad), jnp.float32),
            grid=(nb, nj),
            in_specs=in_specs,
            out_specs=out_specs,
            scratch_shapes=[pltpu.VMEM((tile_b, hlast_pad), jnp.bfloat16)],
            compiler_params=pltpu.CompilerParams(
                dimension_semantics=("parallel", "arbitrary"),
                vmem_limit_bytes=_vmem_limit_bytes()),
            cost_estimate=pl.CostEstimate(flops=int(hidden_flops + recons_flops),
                                          transcendentals=0,
                                          bytes_accessed=int(bytes_acc)),
        )(xp, *flat)

    # ------------------------------------------------------------------
    def _atac_call(self, xp, b_pad, tile_b):
        tn = self.atac_tile_n
        nb = b_pad // tile_b
        nj = self.atac_out_pad // tn
        flops = 2 * b_pad * self.d_in_pad * self.atac_out_pad
        bytes_acc = (int(xp.size) * 2 * nj               # tiny x re-read per N tile
                     + int(self.atac_w.size) * 2          # weight streamed exactly once
                     + b_pad * self.atac_out_pad * 2)     # bf16 store
        return pl.pallas_call(
            _atac_decoder_kernel,
            out_shape=jax.ShapeDtypeStruct((b_pad, self.atac_out_pad), jnp.bfloat16),
            # N tiles OUTER, batch tiles INNER: the weight's block index depends only on
            # the outer axis, so each [d_in_pad, tn] weight slab is DMA'd from HBM once.
            # Megacore splits the parallel N axis, so the aggregate weight read stays 1x.
            grid=(nj, nb),
            in_specs=[pl.BlockSpec((tile_b, self.d_in_pad), lambda j, i: (i, 0)),
                      pl.BlockSpec((self.d_in_pad, tn), lambda j, i: (0, j))],
            out_specs=pl.BlockSpec((tile_b, tn), lambda j, i: (i, j)),
            compiler_params=pltpu.CompilerParams(
                dimension_semantics=("parallel", "arbitrary"),
                vmem_limit_bytes=_vmem_limit_bytes()),
            cost_estimate=pl.CostEstimate(flops=int(flops), transcendentals=0,
                                          bytes_accessed=int(bytes_acc)),
        )(xp, self.atac_w)

    # ------------------------------------------------------------------
    def __call__(self, x):
        B = x.shape[0]
        tile_b = self._pick_tile_b(B)
        b_pad = _round_up(B, tile_b)
        xp = _pad2d(jnp.asarray(x, jnp.float32), b_pad, self.d_in_pad).astype(jnp.bfloat16)

        if self.mode == "rna":
            if self._use_buffered is None:
                try:
                    out = jax.block_until_ready(self._rna_call(xp, b_pad, tile_b, True))
                    self._use_buffered = True
                except Exception:
                    # Fallback if this JAX build rejects pipeline_mode=pl.Buffered(1).
                    out = self._rna_call(xp, b_pad, tile_b, False)
                    self._use_buffered = False
            else:
                out = self._rna_call(xp, b_pad, tile_b, self._use_buffered)
            out = out[:B, :self.rna_out_dim]
        else:
            out = self._atac_call(xp, b_pad, tile_b)
            # bf16 store halves HBM write traffic; upcast at the boundary to match the
            # torch module's f32 output. (The slice is a no-op when B / out_dim are
            # already tile multiples.)
            out = out[:B, :self.atac_out_dim].astype(jnp.float32)
        return out


# ----------------------------------------------------------------------------
# References for sanity checking
# ----------------------------------------------------------------------------
def _reference_mirrored(model, x):
    """Mirrors the kernel numerics exactly (bf16 operands, f32 acc, bf16 ATAC store)."""
    b = x.shape[0]
    h = _pad2d(jnp.asarray(x, jnp.float32), b, model.d_in_pad).astype(jnp.bfloat16)
    if model.mode == "rna":
        for w, bias in model.rna_hidden:
            a = jnp.dot(h, w, preferred_element_type=jnp.float32) + bias
            h = jnp.maximum(a, 0.0).astype(jnp.bfloat16)
        out = jnp.dot(h, model.rna_wr, preferred_element_type=jnp.float32) + model.rna_br
        out = out[:, :model.rna_out_dim]
    else:
        out = jnp.dot(h, model.atac_w, preferred_element_type=jnp.float32)
        out = out.astype(jnp.bfloat16).astype(jnp.float32)   # kernel stores bf16
        out = out[:, :model.atac_out_dim]
    return out


def _reference_torch_semantics(model, x):
    """Unfolded f32 reference matching the PyTorch eval-mode forward."""
    h = x * model._colmask                       # recon_batch_id = zeros
    if model.mode == "rna":
        for (w, b, g, bt, rm, rv) in model._raw_rna:
            y = h @ w + b[None, :]
            y = (y - rm[None, :]) / jnp.sqrt(rv[None, :] + 1e-5) * g[None, :] + bt[None, :]
            h = jnp.maximum(y, 0.0)              # relu; dropout identity in eval
        out = h @ model._raw_wr + model._raw_br
    else:
        out = h @ model._raw_atac_w              # MaskedLinear forward == plain matmul
    if model.dimension_num is not None:
        out = out[:, [model.dimension_num]]
    return out


# ----------------------------------------------------------------------------
if __name__ == "__main__":
    B = 40
    latent_dim = 16
    batch_dims = 4
    decoder_hidden_dims = [32, 64]
    rna_dim = 200     # > 128 so the recons layer spans 2 output tiles (cap=128 below)
    atac_dim = 300    # > 128 so the ATAC path spans 3 N tiles (cap=128 below)

    key = jax.random.PRNGKey(0)
    kx, km = jax.random.split(key)
    x = jax.random.normal(kx, (B, 2 * latent_dim + batch_dims), jnp.float32)
    atac_mask = (jax.random.uniform(km, (latent_dim, atac_dim)) > 0.5).astype(jnp.float32)

    configs = [
        dict(mode="rna", dimension_num=None),
        dict(mode="atac", dimension_num=None),
        dict(mode="rna", dimension_num=5),
        dict(mode="atac", dimension_num=7),
    ]

    for cfg in configs:
        model = ExplainModelLatentZ(latent_dim, batch_dims, decoder_hidden_dims,
                                    rna_dim, atac_dim, seed=0, atac_mask=atac_mask,
                                    max_tile_b=16, rna_tile_n_cap=128,
                                    atac_tile_n_cap=128, **cfg)
        out = jax.block_until_ready(model(x))

        exp_cols = 1 if cfg["dimension_num"] is not None else (
            rna_dim if cfg["mode"] == "rna" else atac_dim)
        assert out.shape == (B, exp_cols), (cfg, out.shape)

        ref_m = _reference_mirrored(model, x)
        assert jnp.allclose(out, ref_m, atol=2e-3, rtol=2e-3), (
            cfg, float(jnp.max(jnp.abs(out - ref_m))))

        ref_s = _reference_torch_semantics(model, x)
        assert jnp.allclose(out, ref_s, atol=5e-2, rtol=5e-2), (
            cfg, float(jnp.max(jnp.abs(out - ref_s))))

    print("KERNEL_OK")
</pallas_src>

<mosaic_0001>
module attributes {stable_mosaic.version = 11 : i64} {
  func.func @_rna_decoder_kernel(%arg0: i32, %arg1: i32, %arg2: memref<16x128xbf16, #tpu.memory_space<vmem>>, %arg3: memref<128x128xbf16, #tpu.memory_space<vmem>>, %arg4: memref<1x128xf32, #tpu.memory_space<vmem>>, %arg5: memref<128x128xbf16, #tpu.memory_space<vmem>>, %arg6: memref<1x128xf32, #tpu.memory_space<vmem>>, %arg7: memref<128x128xbf16, #tpu.memory_space<vmem>>, %arg8: memref<1x128xf32, #tpu.memory_space<vmem>>, %arg9: memref<16x128xf32, #tpu.memory_space<vmem>>, %arg10: memref<16x128xbf16, #tpu.memory_space<vmem>>) attributes {dimension_semantics = [#tpu.dimension_semantics<parallel>, #tpu.dimension_semantics<arbitrary>], iteration_bounds = array<i64: 3, 2>, scalar_prefetch = 0 : i64, scratch_operands = 1 : i64, tpu.core_type = #tpu.core_type<tc>, window_params = [{transform_indices = @transform_0, window_bounds = array<i64: 16, 128>}, {pipeline_mode = #tpu.pipeline_mode<synchronous>, transform_indices = @transform_1, window_bounds = array<i64: 128, 128>}, {pipeline_mode = #tpu.pipeline_mode<synchronous>, transform_indices = @transform_2, window_bounds = array<i64: 1, 128>}, {pipeline_mode = #tpu.pipeline_mode<synchronous>, transform_indices = @transform_3, window_bounds = array<i64: 128, 128>}, {pipeline_mode = #tpu.pipeline_mode<synchronous>, transform_indices = @transform_4, window_bounds = array<i64: 1, 128>}, {transform_indices = @transform_5, window_bounds = array<i64: 128, 128>}, {transform_indices = @transform_6, window_bounds = array<i64: 1, 128>}, {transform_indices = @transform_7, window_bounds = array<i64: 16, 128>}]} {
    %c0_i32 = arith.constant 0 : i32
    %0 = arith.cmpi eq, %arg1, %c0_i32 : i32
    %1 = arith.extui %0 : i1 to i32
    %c0_i32_0 = arith.constant 0 : i32
    %2 = arith.cmpi ne, %1, %c0_i32_0 : i32
    scf.if %2 {
      %c0_8 = arith.constant 0 : index
      %c0_9 = arith.constant 0 : index
      %10 = vector.load %arg2[%c0_8, %c0_9] : memref<16x128xbf16, #tpu.memory_space<vmem>>, vector<16x128xbf16>
      %c0_10 = arith.constant 0 : index
      %c0_11 = arith.constant 0 : index
      %11 = vector.load %arg3[%c0_10, %c0_11] : memref<128x128xbf16, #tpu.memory_space<vmem>>, vector<128x128xbf16>
      %cst_12 = arith.constant dense<0.000000e+00> : vector<16x128xf32>
      %12 = tpu.matmul %10, %11, %cst_12 {dimension_numbers = #tpu.dot_dimension_numbers<[1], [0], [0], [1], [0, 0, 1, 1], [], []>} : vector<16x128xbf16>, vector<128x128xbf16>, vector<16x128xf32> -> vector<16x128xf32>
      %c0_13 = arith.constant 0 : index
      %c0_14 = arith.constant 0 : index
      %13 = vector.load %arg4[%c0_13, %c0_14] : memref<1x128xf32, #tpu.memory_space<vmem>>, vector<1x128xf32>
      %14 = vector.broadcast %13 : vector<1x128xf32> to vector<16x128xf32>
      %15 = arith.addf %12, %14 : vector<16x128xf32>
      %cst_15 = arith.constant 0.000000e+00 : f32
      %16 = vector.broadcast %cst_15 : f32 to vector<16x128xf32>
      %17 = arith.maximumf %15, %16 : vector<16x128xf32>
      %18 = arith.truncf %17 : vector<16x128xf32> to vector<16x128xbf16>
      %c0_16 = arith.constant 0 : index
      %c0_17 = arith.constant 0 : index
      %19 = vector.load %arg5[%c0_16, %c0_17] : memref<128x128xbf16, #tpu.memory_space<vmem>>, vector<128x128xbf16>
      %cst_18 = arith.constant dense<0.000000e+00> : vector<16x128xf32>
      %20 = tpu.matmul %18, %19, %cst_18 {dimension_numbers = #tpu.dot_dimension_numbers<[1], [0], [0], [1], [0, 0, 1, 1], [], []>} : vector<16x128xbf16>, vector<128x128xbf16>, vector<16x128xf32> -> vector<16x128xf32>
      %c0_19 = arith.constant 0 : index
      %c0_20 = arith.constant 0 : index
      %21 = vector.load %arg6[%c0_19, %c0_20] : memref<1x128xf32, #tpu.memory_space<vmem>>, vector<1x128xf32>
      %22 = vector.broadcast %21 : vector<1x128xf32> to vector<16x128xf32>
      %23 = arith.addf %20, %22 : vector<16x128xf32>
      %cst_21 = arith.constant 0.000000e+00 : f32
      %24 = vector.broadcast %cst_21 : f32 to vector<16x128xf32>
      %25 = arith.maximumf %23, %24 : vector<16x128xf32>
      %26 = arith.truncf %25 : vector<16x128xf32> to vector<16x128xbf16>
      %c0_22 = arith.constant 0 : index
      %c0_23 = arith.constant 0 : index
      %27 = vector.load %arg10[%c0_22, %c0_23] : memref<16x128xbf16, #tpu.memory_space<vmem>>, vector<16x128xbf16>
      tpu.vector_store %arg10[%c0_22, %c0_23], %26 {strides = array<i32>} : memref<16x128xbf16, #tpu.memory_space<vmem>>, vector<16x128xbf16>,
    } else {
    }
    %c0 = arith.constant 0 : index
    %c0_1 = arith.constant 0 : index
    %3 = vector.load %arg10[%c0, %c0_1] : memref<16x128xbf16, #tpu.memory_space<vmem>>, vector<16x128xbf16>
    %c0_2 = arith.constant 0 : index
    %c0_3 = arith.constant 0 : index
    %4 = vector.load %arg7[%c0_2, %c0_3] : memref<128x128xbf16, #tpu.memory_space<vmem>>, vector<128x128xbf16>
    %cst = arith.constant dense<0.000000e+00> : vector<16x128xf32>
    %5 = tpu.matmul %3, %4, %cst {dimension_numbers = #tpu.dot_dimension_numbers<[1], [0], [0], [1], [0, 0, 1, 1], [], []>} : vector<16x128xbf16>, vector<128x128xbf16>, vector<16x128xf32> -> vector<16x128xf32>
    %c0_4 = arith.constant 0 : index
    %c0_5 = arith.constant 0 : index
    %6 = vector.load %arg8[%c0_4, %c0_5] : memref<1x128xf32, #tpu.memory_space<vmem>>, vector<1x128xf32>
    %7 = vector.broadcast %6 : vector<1x128xf32> to vector<16x128xf32>
    %8 = arith.addf %5, %7 : vector<16x128xf32>
    %c0_6 = arith.constant 0 : index
    %c0_7 = arith.constant 0 : index
    %9 = vector.load %arg9[%c0_6, %c0_7] : memref<16x128xf32, #tpu.memory_space<vmem>>, vector<16x128xf32>
    tpu.vector_store %arg9[%c0_6, %c0_7], %8 {strides = array<i32>} : memref<16x128xf32, #tpu.memory_space<vmem>>, vector<16x128xf32>,
    return
  }
  func.func @transform_0(%arg0: i32, %arg1: i32) -> (i32, i32) {
    %c0_i32 = arith.constant 0 : i32
    %c0_i32_0 = arith.constant 0 : i32
    return %arg0, %c0_i32 : i32, i32
  }
  func.func @transform_1(%arg0: i32, %arg1: i32) -> (i32, i32) {
    %c0_i32 = arith.constant 0 : i32
    %c0_i32_0 = arith.constant 0 : i32
    %c0_i32_1 = arith.constant 0 : i32
    return %c0_i32, %c0_i32_0 : i32, i32
  }
  func.func @transform_2(%arg0: i32, %arg1: i32) -> (i32, i32) {
    %c0_i32 = arith.constant 0 : i32
    %c0_i32_0 = arith.constant 0 : i32
    %c0_i32_1 = arith.constant 0 : i32
    return %c0_i32, %c0_i32_0 : i32, i32
  }
  func.func @transform_3(%arg0: i32, %arg1: i32) -> (i32, i32) {
    %c0_i32 = arith.constant 0 : i32
    %c0_i32_0 = arith.constant 0 : i32
    %c0_i32_1 = arith.constant 0 : i32
    return %c0_i32, %c0_i32_0 : i32, i32
  }
  func.func @transform_4(%arg0: i32, %arg1: i32) -> (i32, i32) {
    %c0_i32 = arith.constant 0 : i32
    %c0_i32_0 = arith.constant 0 : i32
    %c0_i32_1 = arith.constant 0 : i32
    return %c0_i32, %c0_i32_0 : i32, i32
  }
  func.func @transform_5(%arg0: i32, %arg1: i32) -> (i32, i32) {
    %c0_i32 = arith.constant 0 : i32
    %c0_i32_0 = arith.constant 0 : i32
    return %c0_i32, %arg1 : i32, i32
  }
  func.func @transform_6(%arg0: i32, %arg1: i32) -> (i32, i32) {
    %c0_i32 = arith.constant 0 : i32
    %c0_i32_0 = arith.constant 0 : i32
    return %c0_i32, %arg1 : i32, i32
  }
  func.func @transform_7(%arg0: i32, %arg1: i32) -> (i32, i32) {
    %c0_i32 = arith.constant 0 : i32
    return %arg0, %arg1 : i32, i32
  }
}

module attributes {stable_mosaic.version = 11 : i64} {
  func.func @_rna_decoder_kernel(%arg0: i32, %arg1: i32, %arg2: memref<16x128xbf16, #tpu.memory_space<vmem>>, %arg3: memref<128x128xbf16, #tpu.memory_space<vmem>>, %arg4: memref<1x128xf32, #tpu.memory_space<vmem>>, %arg5: memref<128x128xbf16, #tpu.memory_space<vmem>>, %arg6: memref<1x128xf32, #tpu.memory_space<vmem>>, %arg7: memref<128x128xbf16, #tpu.memory_space<vmem>>, %arg8: memref<1x128xf32, #tpu.memory_space<vmem>>, %arg9: memref<16x128xf32, #tpu.memory_space<vmem>>, %arg10: memref<16x128xbf16, #tpu.memory_space<vmem>>) attributes {dimension_semantics = [#tpu.dimension_semantics<parallel>, #tpu.dimension_semantics<arbitrary>], iteration_bounds = array<i64: 3, 2>, scalar_prefetch = 0 : i64, scratch_operands = 1 : i64, tpu.core_type = #tpu.core_type<tc>, window_params = [{transform_indices = @transform_0, window_bounds = array<i64: 16, 128>}, {pipeline_mode = #tpu.pipeline_mode<synchronous>, transform_indices = @transform_1, window_bounds = array<i64: 128, 128>}, {pipeline_mode = #tpu.pipeline_mode<synchronous>, transform_indices = @transform_2, window_bounds = array<i64: 1, 128>}, {pipeline_mode = #tpu.pipeline_mode<synchronous>, transform_indices = @transform_3, window_bounds = array<i64: 128, 128>}, {pipeline_mode = #tpu.pipeline_mode<synchronous>, transform_indices = @transform_4, window_bounds = array<i64: 1, 128>}, {transform_indices = @transform_5, window_bounds = array<i64: 128, 128>}, {transform_indices = @transform_6, window_bounds = array<i64: 1, 128>}, {transform_indices = @transform_7, window_bounds = array<i64: 16, 128>}]} {
    %c0_i32 = arith.constant 0 : i32
    %0 = arith.cmpi eq, %arg1, %c0_i32 : i32
    %1 = arith.extui %0 : i1 to i32
    %c0_i32_0 = arith.constant 0 : i32
    %2 = arith.cmpi ne, %1, %c0_i32_0 : i32
    scf.if %2 {
      %c0_8 = arith.constant 0 : index
      %c0_9 = arith.constant 0 : index
      %10 = vector.load %arg2[%c0_8, %c0_9] : memref<16x128xbf16, #tpu.memory_space<vmem>>, vector<16x128xbf16>
      %c0_10 = arith.constant 0 : index
      %c0_11 = arith.constant 0 : index
      %11 = vector.load %arg3[%c0_10, %c0_11] : memref<128x128xbf16, #tpu.memory_space<vmem>>, vector<128x128xbf16>
      %cst_12 = arith.constant dense<0.000000e+00> : vector<16x128xf32>
      %12 = tpu.matmul %10, %11, %cst_12 {dimension_numbers = #tpu.dot_dimension_numbers<[1], [0], [0], [1], [0, 0, 1, 1], [], []>} : vector<16x128xbf16>, vector<128x128xbf16>, vector<16x128xf32> -> vector<16x128xf32>
      %c0_13 = arith.constant 0 : index
      %c0_14 = arith.constant 0 : index
      %13 = vector.load %arg4[%c0_13, %c0_14] : memref<1x128xf32, #tpu.memory_space<vmem>>, vector<1x128xf32>
      %14 = vector.broadcast %13 : vector<1x128xf32> to vector<16x128xf32>
      %15 = arith.addf %12, %14 : vector<16x128xf32>
      %cst_15 = arith.constant 0.000000e+00 : f32
      %16 = vector.broadcast %cst_15 : f32 to vector<16x128xf32>
      %17 = arith.maximumf %15, %16 : vector<16x128xf32>
      %18 = arith.truncf %17 : vector<16x128xf32> to vector<16x128xbf16>
      %c0_16 = arith.constant 0 : index
      %c0_17 = arith.constant 0 : index
      %19 = vector.load %arg5[%c0_16, %c0_17] : memref<128x128xbf16, #tpu.memory_space<vmem>>, vector<128x128xbf16>
      %cst_18 = arith.constant dense<0.000000e+00> : vector<16x128xf32>
      %20 = tpu.matmul %18, %19, %cst_18 {dimension_numbers = #tpu.dot_dimension_numbers<[1], [0], [0], [1], [0, 0, 1, 1], [], []>} : vector<16x128xbf16>, vector<128x128xbf16>, vector<16x128xf32> -> vector<16x128xf32>
      %c0_19 = arith.constant 0 : index
      %c0_20 = arith.constant 0 : index
      %21 = vector.load %arg6[%c0_19, %c0_20] : memref<1x128xf32, #tpu.memory_space<vmem>>, vector<1x128xf32>
      %22 = vector.broadcast %21 : vector<1x128xf32> to vector<16x128xf32>
      %23 = arith.addf %20, %22 : vector<16x128xf32>
      %cst_21 = arith.constant 0.000000e+00 : f32
      %24 = vector.broadcast %cst_21 : f32 to vector<16x128xf32>
      %25 = arith.maximumf %23, %24 : vector<16x128xf32>
      %26 = arith.truncf %25 : vector<16x128xf32> to vector<16x128xbf16>
      %c0_22 = arith.constant 0 : index
      %c0_23 = arith.constant 0 : index
      %27 = vector.load %arg10[%c0_22, %c0_23] : memref<16x128xbf16, #tpu.memory_space<vmem>>, vector<16x128xbf16>
      tpu.vector_store %arg10[%c0_22, %c0_23], %26 {strides = array<i32>} : memref<16x128xbf16, #tpu.memory_space<vmem>>, vector<16x128xbf16>,
    } else {
    }
    %c0 = arith.constant 0 : index
    %c0_1 = arith.constant 0 : index
    %3 = vector.load %arg10[%c0, %c0_1] : memref<16x128xbf16, #tpu.memory_space<vmem>>, vector<16x128xbf16>
    %c0_2 = arith.constant 0 : index
    %c0_3 = arith.constant 0 : index
    %4 = vector.load %arg7[%c0_2, %c0_3] : memref<128x128xbf16, #tpu.memory_space<vmem>>, vector<128x128xbf16>
    %cst = arith.constant dense<0.000000e+00> : vector<16x128xf32>
    %5 = tpu.matmul %3, %4, %cst {dimension_numbers = #tpu.dot_dimension_numbers<[1], [0], [0], [1], [0, 0, 1, 1], [], []>} : vector<16x128xbf16>, vector<128x128xbf16>, vector<16x128xf32> -> vector<16x128xf32>
    %c0_4 = arith.constant 0 : index
    %c0_5 = arith.constant 0 : index
    %6 = vector.load %arg8[%c0_4, %c0_5] : memref<1x128xf32, #tpu.memory_space<vmem>>, vector<1x128xf32>
    %7 = vector.broadcast %6 : vector<1x128xf32> to vector<16x128xf32>
    %8 = arith.addf %5, %7 : vector<16x128xf32>
    %c0_6 = arith.constant 0 : index
    %c0_7 = arith.constant 0 : index
    %9 = vector.load %arg9[%c0_6, %c0_7] : memref<16x128xf32, #tpu.memory_space<vmem>>, vector<16x128xf32>
    tpu.vector_store %arg9[%c0_6, %c0_7], %8 {strides = array<i32>} : memref<16x128xf32, #tpu.memory_space<vmem>>, vector<16x128xf32>,
    return
  }
  func.func @transform_0(%arg0: i32, %arg1: i32) -> (i32, i32) {
    %c0_i32 = arith.constant 0 : i32
    %c0_i32_0 = arith.constant 0 : i32
    return %arg0, %c0_i32 : i32, i32
  }
  func.func @transform_1(%arg0: i32, %arg1: i32) -> (i32, i32) {
    %c0_i32 = arith.constant 0 : i32
    %c0_i32_0 = arith.constant 0 : i32
    %c0_i32_1 = arith.constant 0 : i32
    return %c0_i32, %c0_i32_0 : i32, i32
  }
  func.func @transform_2(%arg0: i32, %arg1: i32) -> (i32, i32) {
    %c0_i32 = arith.constant 0 : i32
    %c0_i32_0 = arith.constant 0 : i32
    %c0_i32_1 = arith.constant 0 : i32
    return %c0_i32, %c0_i32_0 : i32, i32
  }
  func.func @transform_3(%arg0: i32, %arg1: i32) -> (i32, i32) {
    %c0_i32 = arith.constant 0 : i32
    %c0_i32_0 = arith.constant 0 : i32
    %c0_i32_1 = arith.constant 0 : i32
    return %c0_i32, %c0_i32_0 : i32, i32
  }
  func.func @transform_4(%arg0: i32, %arg1: i32) -> (i32, i32) {
    %c0_i32 = arith.constant 0 : i32
    %c0_i32_0 = arith.constant 0 : i32
    %c0_i32_1 = arith.constant 0 : i32
    return %c0_i32, %c0_i32_0 : i32, i32
  }
  func.func @transform_5(%arg0: i32, %arg1: i32) -> (i32, i32) {
    %c0_i32 = arith.constant 0 : i32
    %c0_i32_0 = arith.constant 0 : i32
    return %c0_i32, %arg1 : i32, i32
  }
  func.func @transform_6(%arg0: i32, %arg1: i32) -> (i32, i32) {
    %c0_i32 = arith.constant 0 : i32
    %c0_i32_0 = arith.constant 0 : i32
    return %c0_i32, %arg1 : i32, i32
  }
  func.func @transform_7(%arg0: i32, %arg1: i32) -> (i32, i32) {
    %c0_i32 = arith.constant 0 : i32
    return %arg0, %arg1 : i32, i32
  }
}

</mosaic_0001>

<llo_original>
// kernel: tpu_custom_call.1
$region0: #{tpu_custom_call.1}
  #allocation0 [shape = 'u32[]', space=smem, size = 0x4, offset = 0x4, fixed_abs, tag = 'smem constant byte address 0x4 - core index']
  #allocation1 [shape = 'u32[144,128]{1,0:T(1,128)}', space=vmem, size = 0x12000, scoped, tag = 'internal scratch']
  #allocation2 [shape = 'bf16[16,128]{1,0:T(16,128)(2,1)}', space=vmem, size = 0x1000, scoped, tag = 'scratch operand']
  %s0 = inlined_call_operand.hbm [shape: bf16[48,128], index: 0, kind: input, shape index: {}]
  %s1 = inlined_call_operand.hbm [shape: bf16[128,128], index: 1, kind: input, shape index: {}]
  %s2 = inlined_call_operand.vmem [shape: f32[1,128], index: 2, kind: input, shape index: {}]
  %s3 = inlined_call_operand.hbm [shape: bf16[128,128], index: 3, kind: input, shape index: {}]
  %s4 = inlined_call_operand.vmem [shape: f32[1,128], index: 4, kind: input, shape index: {}]
  %s5 = inlined_call_operand.hbm [shape: bf16[128,256], index: 5, kind: input, shape index: {}]
  %s6 = inlined_call_operand.vmem [shape: f32[1,256], index: 6, kind: input, shape index: {}]
  %s7 = inlined_call_operand.hbm [shape: f32[48,256], index: 7, kind: output, shape index: {}]
  %s8 = sld [smem:[#allocation0]]
  $region81: #{tpu_custom_call.1} parent=0
    _
  %s10 = ssub.s32 1, %s8
  %s11 = scalar_select 0, %s10, %s8
  $region1: #{tpu_custom_call.1} parent=0
    #allocation3 [shape = 'u8[8192]{0}', space=vmem, size = 0x2000, scoped, tag = 'input window, operand 0']
    #allocation4 [shape = 's32[2]{0}', space=sflag, size = 0x8, scoped, tag = 'scoped memory for tpu_custom_call.1']
    #allocation5 [shape = 's32[2]{0}', space=sflag, size = 0x8, scoped, tag = 'scoped memory for tpu_custom_call.1']
    #allocation6 [shape = 'u8[32768]{0}', space=vmem, size = 0x8000, scoped, tag = 'input window, operand 1, single buffered']
    #allocation7 [shape = 's32[1]{0}', space=sflag, size = 0x4, scoped, tag = 'scoped memory for tpu_custom_call.1']
    #allocation8 [shape = 'u8[32768]{0}', space=vmem, size = 0x8000, scoped, tag = 'input window, operand 3, single buffered']
    #allocation9 [shape = 'u8[65536]{0}', space=vmem, size = 0x10000, scoped, tag = 'input window, operand 5']
    #allocation10 [shape = 's32[2]{0}', space=sflag, size = 0x8, scoped, tag = 'scoped memory for tpu_custom_call.1']
    #allocation11 [shape = 'u8[16384]{0}', space=vmem, size = 0x4000, scoped, tag = 'output window, operand 0']
    %12 = vsyncpa [#allocation4], 0
    %s13 = scalar_lea.sflag [#allocation4], 1
    %14 = vsyncpa %s13, 0
    %15 = vsyncpa [#allocation7], 0
    %16 = vsyncpa [#allocation10], 0
    %s17 = scalar_lea.sflag [#allocation10], 1
    %18 = vsyncpa %s17, 0
    %19 = vsyncpa [#allocation5], 0
    %s20 = scalar_lea.sflag [#allocation5], 1
    %21 = vsyncpa %s20, 0
    loop: start=0, step=1, limit=8
    $region2: #{tpu_custom_call.1} parent=1 // loop_pre_header
      _
    $region3: #{tpu_custom_call.1} parent=1 // loop_header
      %s23 = sphi 0, %s27
      %p24 = scmp.ge.s32.totalorder %s23, 8
      %s30 = sphi 0, %s42
      %s31 = sphi 0, %s38
      %s32 = sphi 0, %s30
      %s33 = sphi 0, %s31
      %s34 = sphi 0, %s32
      %s35 = sphi 0, %s33
      %s45 = sphi 0, %s47
      %s48 = sphi 0, %s45
      %s49 = sphi 0, %s48
      %s65 = sphi 0, %s49
      %s69 = sphi 0, %s69
      %s71 = sphi 0, %s69
      %s72 = sphi 0, %s71
      %s86 = sphi 0, %s72
      %s90 = sphi 0, %s90
      %s92 = sphi 0, %s90
      %s93 = sphi 0, %s92
      %s107 = sphi 0, %s93
      %s111 = sphi 0, %s111
      %s113 = sphi 0, %s111
      %s114 = sphi 0, %s113
      %s128 = sphi 0, %s114
      %s132 = sphi 0, %s132
      %s134 = sphi 0, %s132
      %s135 = sphi 0, %s134
      %s149 = sphi 0, %s135
      %s155 = sphi 0, %s157
      %s158 = sphi 0, %s155
      %s159 = sphi 0, %s158
      %s175 = sphi 0, %s159
      %s181 = sphi 0, %s183
      %s184 = sphi 0, %s181
      %s185 = sphi 0, %s184
      %s201 = sphi 0, %s185
      %s209 = sphi 0, %s211
      %s212 = sphi 0, %s209
      %s213 = sphi 0, %s212
      %s229 = sphi 0, %s213
    $region4: #{tpu_custom_call.1} parent=1 // loop_header_branch
      %26 = sbr.rel (%p24) target = $region8
    $region5: #{tpu_custom_call.1} parent=1 // loop_body
      %s28 = ssub.s32 %s23, 1
      %s29 = ssub.s32 %s23, 2
      %s36 = sadd.s32 1, %s31
      %p37 = scmp.ge.s32.totalorder %s36, 2
      %s38 = scalar_select %p37, 0, %s36
      %s39 = sadd.s32 1, %s30
      %s40 = scalar_select %p37, %s39, %s30
      %p41 = scmp.ge.s32.totalorder %s40, 3
      %s42 = scalar_select %p41, 0, %s40
      %s43 = ssub.s32 %s30, %s42
      %p44 = scmp.eq.s32.totalorder %s43, 0
      %s46 = sadd.s32 %s45, 1
      %s47 = scalar_select %p44, %s45, %s46
      %p50 = pneg %p44
      %p51 = scmp.eq.s32.totalorder %s23, 5
      %p52 = por %p50, %p51
      %p53 = scmp.ne.s32.totalorder %s45, %s48
      %p54 = scmp.eq.s32.totalorder %s23, 0
      %p55 = por %p53, %p54
      %p56 = scmp.ne.s32.totalorder %s45, %s48
      %p57 = scmp.eq.s32.totalorder %s28, 5
      %p58 = por %p56, %p57
      %p59 = scmp.ne.s32.totalorder %s48, %s49
      %p60 = scmp.eq.s32.totalorder %s28, 0
      %p61 = por %p59, %p60
      %p62 = scmp.ne.s32.totalorder %s48, %s49
      %p63 = scmp.eq.s32.totalorder %s29, 5
      %p64 = por %p62, %p63
      %p66 = scmp.ne.s32.totalorder %s49, %s65
      %p67 = scmp.eq.s32.totalorder %s29, 0
      %p68 = por %p66, %p67
      %s70 = sadd.s32 %s69, 1
      %p73 = scmp.eq.s32.totalorder %s23, 5
      %p74 = scmp.ne.s32.totalorder %s69, %s71
      %p75 = scmp.eq.s32.totalorder %s23, 0
      %p76 = por %p74, %p75
      %p77 = scmp.ne.s32.totalorder %s69, %s71
      %p78 = scmp.eq.s32.totalorder %s28, 5
      %p79 = por %p77, %p78
      %p80 = scmp.ne.s32.totalorder %s71, %s72
      %p81 = scmp.eq.s32.totalorder %s28, 0
      %p82 = por %p80, %p81
      %p83 = scmp.ne.s32.totalorder %s71, %s72
      %p84 = scmp.eq.s32.totalorder %s29, 5
      %p85 = por %p83, %p84
      %p87 = scmp.ne.s32.totalorder %s72, %s86
      %p88 = scmp.eq.s32.totalorder %s29, 0
      %p89 = por %p87, %p88
      %s91 = sadd.s32 %s90, 1
      %p94 = scmp.eq.s32.totalorder %s23, 5
      %p95 = scmp.ne.s32.totalorder %s90, %s92
      %p96 = scmp.eq.s32.totalorder %s23, 0
      %p97 = por %p95, %p96
      %p98 = scmp.ne.s32.totalorder %s90, %s92
      %p99 = scmp.eq.s32.totalorder %s28, 5
      %p100 = por %p98, %p99
      %p101 = scmp.ne.s32.totalorder %s92, %s93
      %p102 = scmp.eq.s32.totalorder %s28, 0
      %p103 = por %p101, %p102
      %p104 = scmp.ne.s32.totalorder %s92, %s93
      %p105 = scmp.eq.s32.totalorder %s29, 5
      %p106 = por %p104, %p105
      %p108 = scmp.ne.s32.totalorder %s93, %s107
      %p109 = scmp.eq.s32.totalorder %s29, 0
      %p110 = por %p108, %p109
      %s112 = sadd.s32 %s111, 1
      %p115 = scmp.eq.s32.totalorder %s23, 5
      %p116 = scmp.ne.s32.totalorder %s111, %s113
      %p117 = scmp.eq.s32.totalorder %s23, 0
      %p118 = por %p116, %p117
      %p119 = scmp.ne.s32.totalorder %s111, %s113
      %p120 = scmp.eq.s32.totalorder %s28, 5
      %p121 = por %p119, %p120
      %p122 = scmp.ne.s32.totalorder %s113, %s114
      %p123 = scmp.eq.s32.totalorder %s28, 0
      %p124 = por %p122, %p123
      %p125 = scmp.ne.s32.totalorder %s113, %s114
      %p126 = scmp.eq.s32.totalorder %s29, 5
      %p127 = por %p125, %p126
      %p129 = scmp.ne.s32.totalorder %s114, %s128
      %p130 = scmp.eq.s32.totalorder %s29, 0
      %p131 = por %p129, %p130
      %s133 = sadd.s32 %s132, 1
      %p136 = scmp.eq.s32.totalorder %s23, 5
      %p137 = scmp.ne.s32.totalorder %s132, %s134
      %p138 = scmp.eq.s32.totalorder %s23, 0
      %p139 = por %p137, %p138
      %p140 = scmp.ne.s32.totalorder %s132, %s134
      %p141 = scmp.eq.s32.totalorder %s28, 5
      %p142 = por %p140, %p141
      %p143 = scmp.ne.s32.totalorder %s134, %s135
      %p144 = scmp.eq.s32.totalorder %s28, 0
      %p145 = por %p143, %p144
      %p146 = scmp.ne.s32.totalorder %s134, %s135
      %p147 = scmp.eq.s32.totalorder %s29, 5
      %p148 = por %p146, %p147
      %p150 = scmp.ne.s32.totalorder %s135, %s149
      %p151 = scmp.eq.s32.totalorder %s29, 0
      %p152 = por %p150, %p151
      %s153 = ssub.s32 %s31, %s38
      %p154 = scmp.eq.s32.totalorder %s153, 0
      %s156 = sadd.s32 %s155, 1
      %s157 = scalar_select %p154, %s155, %s156
      %p160 = pneg %p154
      %p161 = scmp.eq.s32.totalorder %s23, 5
      %p162 = por %p160, %p161
      %p163 = scmp.ne.s32.totalorder %s155, %s158
      %p164 = scmp.eq.s32.totalorder %s23, 0
      %p165 = por %p163, %p164
      %p166 = scmp.ne.s32.totalorder %s155, %s158
      %p167 = scmp.eq.s32.totalorder %s28, 5
      %p168 = por %p166, %p167
      %p169 = scmp.ne.s32.totalorder %s158, %s159
      %p170 = scmp.eq.s32.totalorder %s28, 0
      %p171 = por %p169, %p170
      %p172 = scmp.ne.s32.totalorder %s158, %s159
      %p173 = scmp.eq.s32.totalorder %s29, 5
      %p174 = por %p172, %p173
      %p176 = scmp.ne.s32.totalorder %s159, %s175
      %p177 = scmp.eq.s32.totalorder %s29, 0
      %p178 = por %p176, %p177
      %s179 = ssub.s32 %s31, %s38
      %p180 = scmp.eq.s32.totalorder %s179, 0
      %s182 = sadd.s32 %s181, 1
      %s183 = scalar_select %p180, %s181, %s182
      %p186 = pneg %p180
      %p187 = scmp.eq.s32.totalorder %s23, 5
      %p188 = por %p186, %p187
      %p189 = scmp.ne.s32.totalorder %s181, %s184
      %p190 = scmp.eq.s32.totalorder %s23, 0
      %p191 = por %p189, %p190
      %p192 = scmp.ne.s32.totalorder %s181, %s184
      %p193 = scmp.eq.s32.totalorder %s28, 5
      %p194 = por %p192, %p193
      %p195 = scmp.ne.s32.totalorder %s184, %s185
      %p196 = scmp.eq.s32.totalorder %s28, 0
      %p197 = por %p195, %p196
      %p198 = scmp.ne.s32.totalorder %s184, %s185
      %p199 = scmp.eq.s32.totalorder %s29, 5
      %p200 = por %p198, %p199
      %p202 = scmp.ne.s32.totalorder %s185, %s201
      %p203 = scmp.eq.s32.totalorder %s29, 0
      %p204 = por %p202, %p203
      %s205 = ssub.s32 %s30, %s42
      %s206 = ssub.s32 %s31, %s38
      %s207 = sor.u32 %s205, %s206
      %p208 = scmp.eq.s32.totalorder %s207, 0
      %s210 = sadd.s32 %s209, 1
      %s211 = scalar_select %p208, %s209, %s210
      %p214 = pneg %p208
      %p215 = scmp.eq.s32.totalorder %s23, 5
      %p216 = por %p214, %p215
      %p217 = scmp.ne.s32.totalorder %s209, %s212
      %p218 = scmp.eq.s32.totalorder %s23, 0
      %p219 = por %p217, %p218
      %p220 = scmp.ne.s32.totalorder %s209, %s212
      %p221 = scmp.eq.s32.totalorder %s28, 5
      %p222 = por %p220, %p221
      %p223 = scmp.ne.s32.totalorder %s212, %s213
      %p224 = scmp.eq.s32.totalorder %s28, 0
      %p225 = por %p223, %p224
      %p226 = scmp.ne.s32.totalorder %s212, %s213
      %p227 = scmp.eq.s32.totalorder %s29, 5
      %p228 = por %p226, %p227
      %p230 = scmp.ne.s32.totalorder %s213, %s229
      %p231 = scmp.eq.s32.totalorder %s29, 0
      %p232 = por %p230, %p231
      %p233 = scmp.le.s32.totalorder 1, %s23
      %p234 = scmp.lt.s32.totalorder %s23, 7
      %p235 = pnand %p233, %p234
      %p236 = pneg %p235
      // Predicated region
      $region9: #{tpu_custom_call.1} parent=5 // pred_check
        _
      $region10: #{tpu_custom_call.1} parent=5 // pred_check_branch
        %238 = sbr.rel (%p235) target = $region12
      $region11: #{tpu_custom_call.1} parent=5 // pred_region
        %s239 = ssub.s32 %s23, 1
        // Predicated region
        $region13: #{tpu_custom_call.1} parent=11 // pred_check
          %p240 = pneg %p82
        $region14: #{tpu_custom_call.1} parent=11 // pred_check_branch
          %242 = sbr.rel (%p240) target = $region16
        $region15: #{tpu_custom_call.1} parent=11 // pred_region
          %s244 = ssub.s32 1024, 1024
          %245 = vsyncadd [#allocation7], %s244
          %s246 = sshll.u32 [#allocation6], 4
          %s247 = int_to_ptr.vmem [resolvable:$true] %s246
          %252 = dma.hbm_to_vmem [thread:$0]  %s1, 1024, %s247, [#allocation7], 64, 64, 4
        $region16: #{tpu_custom_call.1} parent=11 // pred_fallthru
          _
        // Predicated region
        $region17: #{tpu_custom_call.1} parent=11 // pred_check
          %p253 = pneg %p103
        $region18: #{tpu_custom_call.1} parent=11 // pred_check_branch
          %255 = sbr.rel (%p253) target = $region20
        $region19: #{tpu_custom_call.1} parent=11 // pred_region
          _
        $region20: #{tpu_custom_call.1} parent=11 // pred_fallthru
          _
        // Predicated region
        $region21: #{tpu_custom_call.1} parent=11 // pred_check
          %p256 = pneg %p124
        $region22: #{tpu_custom_call.1} parent=11 // pred_check_branch
          %258 = sbr.rel (%p256) target = $region24
        $region23: #{tpu_custom_call.1} parent=11 // pred_region
          %s260 = ssub.s32 1024, 1024
          %261 = vsyncadd [#allocation7], %s260
          %s262 = sshll.u32 [#allocation8], 4
          %s263 = int_to_ptr.vmem [resolvable:$true] %s262
          %268 = dma.hbm_to_vmem [thread:$0]  %s3, 1024, %s263, [#allocation7], 64, 64, 4
        $region24: #{tpu_custom_call.1} parent=11 // pred_fallthru
          _
        // Predicated region
        $region25: #{tpu_custom_call.1} parent=11 // pred_check
          %p269 = pneg %p145
        $region26: #{tpu_custom_call.1} parent=11 // pred_check_branch
          %271 = sbr.rel (%p269) target = $region28
        $region27: #{tpu_custom_call.1} parent=11 // pred_region
          _
        $region28: #{tpu_custom_call.1} parent=11 // pred_fallthru
          _
      $region12: #{tpu_custom_call.1} parent=5 // pred_fallthru
        _
      %p272 = scmp.lt.s32.totalorder %s23, 6
      // Predicated region
      $region29: #{tpu_custom_call.1} parent=5 // pred_check
        %p273 = pneg %p272
      $region30: #{tpu_custom_call.1} parent=5 // pred_check_branch
        %275 = sbr.rel (%p273) target = $region32
      $region31: #{tpu_custom_call.1} parent=5 // pred_region
        // Predicated region
        $region33: #{tpu_custom_call.1} parent=31 // pred_check
          %p276 = pneg %p55
        $region34: #{tpu_custom_call.1} parent=31 // pred_check_branch
          %278 = sbr.rel (%p276) target = $region36
        $region35: #{tpu_custom_call.1} parent=31 // pred_region
          %s279 = sand.u32 %s45, 1
          %s280 = scalar_lea.sflag [#allocation4], %s279
          %s281 = sand.u32 %s45, 1
          %s282 = smul.addr %s281, 8
          %s283 = scalar_lea.vmem [#allocation3], %s282
          %s284 = smul.u32 2, %s30
          %s286 = ssub.s32 128, 128
          %287 = vsyncadd %s280, %s286
          %s288 = smul.addr %s284, 64
          %s289 = scalar_lea.hbm %s0, %s288
          %s290 = sshll.u32 %s283, 4
          %s291 = int_to_ptr.vmem [resolvable:$true] %s290
          %296 = dma.hbm_to_vmem [thread:$0]  %s289, 128, %s291, %s280, 64, 64, 4
        $region36: #{tpu_custom_call.1} parent=31 // pred_fallthru
          _
        // Predicated region
        $region37: #{tpu_custom_call.1} parent=31 // pred_check
          %p297 = pneg %p165
        $region38: #{tpu_custom_call.1} parent=31 // pred_check_branch
          %299 = sbr.rel (%p297) target = $region40
        $region39: #{tpu_custom_call.1} parent=31 // pred_region
          %s300 = sand.u32 %s155, 1
          %s301 = scalar_lea.sflag [#allocation10], %s300
          %s302 = sand.u32 %s155, 1
          %s303 = smul.addr %s302, 64
          %s304 = scalar_lea.vmem [#allocation9], %s303
          %s306 = ssub.s32 1024, 1024
          %307 = vsyncadd %s301, %s306
          %s308 = smul.addr %s31, 64
          %s309 = scalar_lea.hbm %s5, %s308
          %s310 = sshll.u32 %s304, 4
          %s311 = int_to_ptr.vmem [resolvable:$true] %s310
          %316 = dma.hbm_to_vmem [thread:$0]  %s309, 1024, %s311, %s301, 128, 64, 4
        $region40: #{tpu_custom_call.1} parent=31 // pred_fallthru
          _
        // Predicated region
        $region41: #{tpu_custom_call.1} parent=31 // pred_check
          %p317 = pneg %p191
        $region42: #{tpu_custom_call.1} parent=31 // pred_check_branch
          %319 = sbr.rel (%p317) target = $region44
        $region43: #{tpu_custom_call.1} parent=31 // pred_region
          %p320 = scmp.lt.s32.totalorder %s31, 1
          %s321 = scalar_select %p320, %s31, 1
          %s322 = scalar_lea.vmem %s6, %s321
        $region44: #{tpu_custom_call.1} parent=31 // pred_fallthru
          _
      $region32: #{tpu_custom_call.1} parent=5 // pred_fallthru
        _
      %p323 = scmp.le.s32.totalorder 1, %s23
      %p324 = scmp.lt.s32.totalorder %s23, 7
      %p325 = pnand %p323, %p324
      %p326 = pneg %p325
      // Predicated region
      $region45: #{tpu_custom_call.1} parent=5 // pred_check
        _
      $region46: #{tpu_custom_call.1} parent=5 // pred_check_branch
        %328 = sbr.rel (%p325) target = $region48
      $region47: #{tpu_custom_call.1} parent=5 // pred_region
        %s329 = ssub.s32 %s23, 1
        %s330 = sand.u32 %s48, 1
        %s331 = scalar_lea.sflag [#allocation4], %s330
        %s332 = sand.u32 %s48, 1
        %s333 = smul.addr %s332, 8
        %s334 = scalar_lea.vmem [#allocation3], %s333
        // Predicated region
        $region49: #{tpu_custom_call.1} parent=47 // pred_check
          %p335 = pneg %p61
        $region50: #{tpu_custom_call.1} parent=47 // pred_check_branch
          %337 = sbr.rel (%p335) target = $region52
        $region51: #{tpu_custom_call.1} parent=47 // pred_region
          %338 = dma.done %s331, 128
        $region52: #{tpu_custom_call.1} parent=47 // pred_fallthru
          _
        // Predicated region
        $region53: #{tpu_custom_call.1} parent=47 // pred_check
          %p339 = pneg %p82
        $region54: #{tpu_custom_call.1} parent=47 // pred_check_branch
          %341 = sbr.rel (%p339) target = $region56
        $region55: #{tpu_custom_call.1} parent=47 // pred_region
          %342 = dma.done [#allocation7], 1024
        $region56: #{tpu_custom_call.1} parent=47 // pred_fallthru
          _
        // Predicated region
        $region57: #{tpu_custom_call.1} parent=47 // pred_check
          %p343 = pneg %p124
        $region58: #{tpu_custom_call.1} parent=47 // pred_check_branch
          %345 = sbr.rel (%p343) target = $region60
        $region59: #{tpu_custom_call.1} parent=47 // pred_region
          %346 = dma.done [#allocation7], 1024
        $region60: #{tpu_custom_call.1} parent=47 // pred_fallthru
          _
        %s347 = sand.u32 %s158, 1
        %s348 = scalar_lea.sflag [#allocation10], %s347
        %s349 = sand.u32 %s158, 1
        %s350 = smul.addr %s349, 64
        %s351 = scalar_lea.vmem [#allocation9], %s350
        // Predicated region
        $region61: #{tpu_custom_call.1} parent=47 // pred_check
          %p352 = pneg %p171
        $region62: #{tpu_custom_call.1} parent=47 // pred_check_branch
          %354 = sbr.rel (%p352) target = $region64
        $region63: #{tpu_custom_call.1} parent=47 // pred_region
          %355 = dma.done %s348, 1024
        $region64: #{tpu_custom_call.1} parent=47 // pred_fallthru
          _
        %s356 = sand.u32 %s48, 1
        %s357 = scalar_lea.sflag [#allocation4], %s356
        %s358 = sand.u32 %s48, 1
        %s359 = smul.addr %s358, 8
        %s360 = scalar_lea.vmem [#allocation3], %s359
        %p361 = pneg %p61
        %p362 = pneg %p58
        %p363 = pneg %p82
        %p364 = pneg %p79
        %p365 = pneg %p103
        %p366 = pneg %p100
        %p367 = pneg %p124
        %p368 = pneg %p121
        %p369 = pneg %p145
        %p370 = pneg %p142
        %s371 = sand.u32 %s158, 1
        %s372 = scalar_lea.sflag [#allocation10], %s371
        %s373 = sand.u32 %s158, 1
        %s374 = smul.addr %s373, 64
        %s375 = scalar_lea.vmem [#allocation9], %s374
        %p376 = pneg %p171
        %p377 = pneg %p168
        %p378 = scmp.lt.s32.totalorder %s33, 1
        %s379 = scalar_select %p378, %s33, 1
        %s380 = scalar_lea.vmem %s6, %s379
        %p381 = pneg %p197
        %p382 = pneg %p194
        %p383 = pneg %p225
        %p384 = pneg %p222
        %s385 = sand.u32 %s212, 1
        %s386 = scalar_lea.sflag [#allocation5], %s385
        %s387 = sand.u32 %s212, 1
        %s388 = smul.addr %s387, 16
        %s389 = scalar_lea.vmem [#allocation11], %s388
        %s390 = smul.u32 2, %s32
        %p391 = scmp.lt.s32.totalorder %s33, 1
        %s392 = scalar_select %p391, %s33, 1
        %s393 = scalar_lea.vmem %s6, %s392
        %s394 = smul.u32 2, %s32
        %p396 = scmp.eq.s32.totalorder %s33, 0
        // Predicated region
        $region65: #{tpu_custom_call.1} parent=47 // pred_check
          %p397 = pneg %p396
        $region66: #{tpu_custom_call.1} parent=47 // pred_check_branch
          %399 = sbr.rel (%p397) target = $region68
        $region67: #{tpu_custom_call.1} parent=47 // pred_region
          %v400 = vld [vmem:[%s334] sm:$0xf]
          %v401 = vld [vmem:[%s334 + $0x4] sm:$0xf]
          %v402 = vld [vmem:[#allocation6] sm:$0xf]
          %v403 = vld [vmem:[#allocation6 + $0x4] sm:$0xf]
          %v404 = vld [vmem:[#allocation6 + $0x8] sm:$0xf]
          %v405 = vld [vmem:[#allocation6 + $0xc] sm:$0xf]
          %v406 = vld [vmem:[#allocation6 + $0x10] sm:$0xf]
          %v407 = vld [vmem:[#allocation6 + $0x14] sm:$0xf]
          %v408 = vld [vmem:[#allocation6 + $0x18] sm:$0xf]
          %v409 = vld [vmem:[#allocation6 + $0x1c] sm:$0xf]
          %v410 = vld [vmem:[#allocation6 + $0x20] sm:$0xf]
          %v411 = vld [vmem:[#allocation6 + $0x24] sm:$0xf]
          %v412 = vld [vmem:[#allocation6 + $0x28] sm:$0xf]
          %v413 = vld [vmem:[#allocation6 + $0x2c] sm:$0xf]
          %v414 = vld [vmem:[#allocation6 + $0x30] sm:$0xf]
          %v415 = vld [vmem:[#allocation6 + $0x34] sm:$0xf]
          %v416 = vld [vmem:[#allocation6 + $0x38] sm:$0xf]
          %v417 = vld [vmem:[#allocation6 + $0x3c] sm:$0xf]
          %v418 = vld [vmem:[%s2] sm:$0x1]
          %v420 = vlaneseq
          %v421 = vshrl.u32 %v420, 7
          %v422 = vsub.s32 0, %v421
          %v423 = vrot.slane %v418, %v422
          %v427 = vunpack.c.l.b16 %v400
          %v428 = vunpack.c.l.b16 %v401
          %v429 = vpack.c.b16 %v428, %v427
          %v447 = vunpack.c.l.b16 %v402
          %v448 = vunpack.c.l.b16 %v403
          %v449 = vunpack.c.l.b16 %v404
          %v450 = vunpack.c.l.b16 %v405
          %v451 = vunpack.c.l.b16 %v406
          %v452 = vunpack.c.l.b16 %v407
          %v453 = vunpack.c.l.b16 %v408
          %v454 = vunpack.c.l.b16 %v409
          %v455 = vunpack.c.l.b16 %v410
          %v456 = vunpack.c.l.b16 %v411
          %v457 = vunpack.c.l.b16 %v412
          %v458 = vunpack.c.l.b16 %v413
          %v459 = vunpack.c.l.b16 %v414
          %v460 = vunpack.c.l.b16 %v415
          %v461 = vunpack.c.l.b16 %v416
          %v462 = vunpack.c.l.b16 %v417
          %v463 = vpack.c.b16 %v448, %v447
          %v464 = vpack.c.b16 %v450, %v449
          %v465 = vpack.c.b16 %v452, %v451
          %v466 = vpack.c.b16 %v454, %v453
          %v467 = vpack.c.b16 %v456, %v455
          %v468 = vpack.c.b16 %v458, %v457
          %v469 = vpack.c.b16 %v460, %v459
          %v470 = vpack.c.b16 %v462, %v461
          %479 = vmatprep.subr.bf16.mxu0 0
          %480 = vmatpush1.bf16.msra.mxu0 %v463
          %481 = vmatprep.subr.bf16.mxu0 0
          %482 = vmatpush1.bf16.msra.mxu0 %v464
          %483 = vmatprep.subr.bf16.mxu0 0
          %484 = vmatpush1.bf16.msra.mxu0 %v465
          %485 = vmatprep.subr.bf16.mxu0 0
          %486 = vmatpush1.bf16.msra.mxu0 %v466
          %487 = vmatprep.subr.bf16.mxu0 0
          %488 = vmatpush1.bf16.msra.mxu0 %v467
          %489 = vmatprep.subr.bf16.mxu0 0
          %490 = vmatpush1.bf16.msra.mxu0 %v468
          %491 = vmatprep.subr.bf16.mxu0 0
          %492 = vmatpush1.bf16.msra.mxu0 %v469
          %493 = vmatprep.subr.bf16.mxu0 0
          %494 = vmatpush1.bf16.msra.mxu0 %v470
          %495 = vmatprep.subr.bf16.mxu0 0
          %496 = vmatpush1.bf16.msra.mxu0 0
          %497 = vmatprep.subr.bf16.mxu0 0
          %498 = vmatpush1.bf16.msra.mxu0 0
          %499 = vmatprep.subr.bf16.mxu0 0
          %500 = vmatpush1.bf16.msra.mxu0 0
          %501 = vmatprep.subr.bf16.mxu0 0
          %502 = vmatpush1.bf16.msra.mxu0 0
          %503 = vmatprep.subr.bf16.mxu0 0
          %504 = vmatpush1.bf16.msra.mxu0 0
          %505 = vmatprep.subr.bf16.mxu0 0
          %506 = vmatpush1.bf16.msra.mxu0 0
          %507 = vmatprep.subr.bf16.mxu0 0
          %508 = vmatpush1.bf16.msra.mxu0 0
          %509 = vmatprep.subr.bf16.mxu0 0
          %510 = vmatpush1.bf16.msra.mxu0 0
          %511 = vmatprep.mubr.bf16.mxu0 0
          %512 = vmatmul.mubr.bf16.gmra.mrb[0].mxu0 %v429
          %v513 = vpop.f32.mrb[0].mxu0
          %v514 = vadd.f32 %v423, %v513
          %v515 = vpop.f32.mrb[0].mxu0
          %v516 = vpop.f32.mrb[0].mxu0
          %v517 = vadd.f32 %v423, %v516
          %v518 = vpop.f32.mrb[0].mxu0
          %519 = vdwg.mxu0
          %v520 = vmax.f32 %v514, 0.0
          %v521 = vmax.f32 %v517, 0.0
          %v522 = vpack.c.bf16 %v521, %v520
          %v523 = vld [vmem:[#allocation8] sm:$0xf]
          %v524 = vld [vmem:[#allocation8 + $0x4] sm:$0xf]
          %v525 = vld [vmem:[#allocation8 + $0x8] sm:$0xf]
          %v526 = vld [vmem:[#allocation8 + $0xc] sm:$0xf]
          %v527 = vld [vmem:[#allocation8 + $0x10] sm:$0xf]
          %v528 = vld [vmem:[#allocation8 + $0x14] sm:$0xf]
          %v529 = vld [vmem:[#allocation8 + $0x18] sm:$0xf]
          %v530 = vld [vmem:[#allocation8 + $0x1c] sm:$0xf]
          %v531 = vld [vmem:[#allocation8 + $0x20] sm:$0xf]
          %v532 = vld [vmem:[#allocation8 + $0x24] sm:$0xf]
          %v533 = vld [vmem:[#allocation8 + $0x28] sm:$0xf]
          %v534 = vld [vmem:[#allocation8 + $0x2c] sm:$0xf]
          %v535 = vld [vmem:[#allocation8 + $0x30] sm:$0xf]
          %v536 = vld [vmem:[#allocation8 + $0x34] sm:$0xf]
          %v537 = vld [vmem:[#allocation8 + $0x38] sm:$0xf]
          %v538 = vld [vmem:[#allocation8 + $0x3c] sm:$0xf]
          %v539 = vld [vmem:[%s4] sm:$0x1]
          %v541 = vlaneseq
          %v542 = vshrl.u32 %v541, 7
          %v543 = vsub.s32 0, %v542
          %v544 = vrot.slane %v539, %v543
          %v562 = vunpack.c.l.b16 %v523
          %v563 = vunpack.c.l.b16 %v524
          %v564 = vunpack.c.l.b16 %v525
          %v565 = vunpack.c.l.b16 %v526
          %v566 = vunpack.c.l.b16 %v527
          %v567 = vunpack.c.l.b16 %v528
          %v568 = vunpack.c.l.b16 %v529
          %v569 = vunpack.c.l.b16 %v530
          %v570 = vunpack.c.l.b16 %v531
          %v571 = vunpack.c.l.b16 %v532
          %v572 = vunpack.c.l.b16 %v533
          %v573 = vunpack.c.l.b16 %v534
          %v574 = vunpack.c.l.b16 %v535
          %v575 = vunpack.c.l.b16 %v536
          %v576 = vunpack.c.l.b16 %v537
          %v577 = vunpack.c.l.b16 %v538
          %v578 = vpack.c.b16 %v563, %v562
          %v579 = vpack.c.b16 %v565, %v564
          %v580 = vpack.c.b16 %v567, %v566
          %v581 = vpack.c.b16 %v569, %v568
          %v582 = vpack.c.b16 %v571, %v570
          %v583 = vpack.c.b16 %v573, %v572
          %v584 = vpack.c.b16 %v575, %v574
          %v585 = vpack.c.b16 %v577, %v576
          %594 = vmatprep.subr.bf16.mxu0 0
          %595 = vmatpush1.bf16.msra.mxu0 %v578
          %596 = vmatprep.subr.bf16.mxu0 0
          %597 = vmatpush1.bf16.msra.mxu0 %v579
          %598 = vmatprep.subr.bf16.mxu0 0
          %599 = vmatpush1.bf16.msra.mxu0 %v580
          %600 = vmatprep.subr.bf16.mxu0 0
          %601 = vmatpush1.bf16.msra.mxu0 %v581
          %602 = vmatprep.subr.bf16.mxu0 0
          %603 = vmatpush1.bf16.msra.mxu0 %v582
          %604 = vmatprep.subr.bf16.mxu0 0
          %605 = vmatpush1.bf16.msra.mxu0 %v583
          %606 = vmatprep.subr.bf16.mxu0 0
          %607 = vmatpush1.bf16.msra.mxu0 %v584
          %608 = vmatprep.subr.bf16.mxu0 0
          %609 = vmatpush1.bf16.msra.mxu0 %v585
          %610 = vmatprep.subr.bf16.mxu0 0
          %611 = vmatpush1.bf16.msra.mxu0 0
          %612 = vmatprep.subr.bf16.mxu0 0
          %613 = vmatpush1.bf16.msra.mxu0 0
          %614 = vmatprep.subr.bf16.mxu0 0
          %615 = vmatpush1.bf16.msra.mxu0 0
          %616 = vmatprep.subr.bf16.mxu0 0
          %617 = vmatpush1.bf16.msra.mxu0 0
          %618 = vmatprep.subr.bf16.mxu0 0
          %619 = vmatpush1.bf16.msra.mxu0 0
          %620 = vmatprep.subr.bf16.mxu0 0
          %621 = vmatpush1.bf16.msra.mxu0 0
          %622 = vmatprep.subr.bf16.mxu0 0
          %623 = vmatpush1.bf16.msra.mxu0 0
          %624 = vmatprep.subr.bf16.mxu0 0
          %625 = vmatpush1.bf16.msra.mxu0 0
          %626 = vmatprep.mubr.bf16.mxu0 0
          %627 = vmatmul.mubr.bf16.gmra.mrb[0].mxu0 %v522
          %v628 = vpop.f32.mrb[0].mxu0
          %v629 = vadd.f32 %v544, %v628
          %v630 = vpop.f32.mrb[0].mxu0
          %v631 = vpop.f32.mrb[0].mxu0
          %v632 = vadd.f32 %v544, %v631
          %v633 = vpop.f32.mrb[0].mxu0
          %634 = vdwg.mxu0
          %v635 = vmax.f32 %v629, 0.0
          %v636 = vmax.f32 %v632, 0.0
          %v637 = vpack.c.bf16 %v636, %v635
          %638 = vst [vmem:[#allocation2] sm:$0xff] %v637
        $region68: #{tpu_custom_call.1} parent=47 // pred_fallthru
          _
        %v639 = vld [vmem:[#allocation2] sm:$0xff]
        %v640 = vld [vmem:[%s351] sm:$0xf]
        %v641 = vld [vmem:[%s351 + $0x4] sm:$0xf]
        %v642 = vld [vmem:[%s351 + $0x8] sm:$0xf]
        %v643 = vld [vmem:[%s351 + $0xc] sm:$0xf]
        %v644 = vld [vmem:[%s351 + $0x10] sm:$0xf]
        %v645 = vld [vmem:[%s351 + $0x14] sm:$0xf]
        %v646 = vld [vmem:[%s351 + $0x18] sm:$0xf]
        %v647 = vld [vmem:[%s351 + $0x1c] sm:$0xf]
        %v648 = vld [vmem:[%s351 + $0x20] sm:$0xf]
        %v649 = vld [vmem:[%s351 + $0x24] sm:$0xf]
        %v650 = vld [vmem:[%s351 + $0x28] sm:$0xf]
        %v651 = vld [vmem:[%s351 + $0x2c] sm:$0xf]
        %v652 = vld [vmem:[%s351 + $0x30] sm:$0xf]
        %v653 = vld [vmem:[%s351 + $0x34] sm:$0xf]
        %v654 = vld [vmem:[%s351 + $0x38] sm:$0xf]
        %v655 = vld [vmem:[%s351 + $0x3c] sm:$0xf]
        %v656 = vld [vmem:[%s393] sm:$0x1]
        %v658 = vlaneseq
        %v659 = vshrl.u32 %v658, 7
        %v660 = vsub.s32 0, %v659
        %v661 = vrot.slane %v656, %v660
        %v679 = vunpack.c.l.b16 %v640
        %v680 = vunpack.c.l.b16 %v641
        %v681 = vunpack.c.l.b16 %v642
        %v682 = vunpack.c.l.b16 %v643
        %v683 = vunpack.c.l.b16 %v644
        %v684 = vunpack.c.l.b16 %v645
        %v685 = vunpack.c.l.b16 %v646
        %v686 = vunpack.c.l.b16 %v647
        %v687 = vunpack.c.l.b16 %v648
        %v688 = vunpack.c.l.b16 %v649
        %v689 = vunpack.c.l.b16 %v650
        %v690 = vunpack.c.l.b16 %v651
        %v691 = vunpack.c.l.b16 %v652
        %v692 = vunpack.c.l.b16 %v653
        %v693 = vunpack.c.l.b16 %v654
        %v694 = vunpack.c.l.b16 %v655
        %v695 = vpack.c.b16 %v680, %v679
        %v696 = vpack.c.b16 %v682, %v681
        %v697 = vpack.c.b16 %v684, %v683
        %v698 = vpack.c.b16 %v686, %v685
        %v699 = vpack.c.b16 %v688, %v687
        %v700 = vpack.c.b16 %v690, %v689
        %v701 = vpack.c.b16 %v692, %v691
        %v702 = vpack.c.b16 %v694, %v693
        %711 = vmatprep.subr.bf16.mxu0 0
        %712 = vmatpush1.bf16.msra.mxu0 %v695
        %713 = vmatprep.subr.bf16.mxu0 0
        %714 = vmatpush1.bf16.msra.mxu0 %v696
        %715 = vmatprep.subr.bf16.mxu0 0
        %716 = vmatpush1.bf16.msra.mxu0 %v697
        %717 = vmatprep.subr.bf16.mxu0 0
        %718 = vmatpush1.bf16.msra.mxu0 %v698
        %719 = vmatprep.subr.bf16.mxu0 0
        %720 = vmatpush1.bf16.msra.mxu0 %v699
        %721 = vmatprep.subr.bf16.mxu0 0
        %722 = vmatpush1.bf16.msra.mxu0 %v700
        %723 = vmatprep.subr.bf16.mxu0 0
        %724 = vmatpush1.bf16.msra.mxu0 %v701
        %725 = vmatprep.subr.bf16.mxu0 0
        %726 = vmatpush1.bf16.msra.mxu0 %v702
        %727 = vmatprep.subr.bf16.mxu0 0
        %728 = vmatpush1.bf16.msra.mxu0 0
        %729 = vmatprep.subr.bf16.mxu0 0
        %730 = vmatpush1.bf16.msra.mxu0 0
        %731 = vmatprep.subr.bf16.mxu0 0
        %732 = vmatpush1.bf16.msra.mxu0 0
        %733 = vmatprep.subr.bf16.mxu0 0
        %734 = vmatpush1.bf16.msra.mxu0 0
        %735 = vmatprep.subr.bf16.mxu0 0
        %736 = vmatpush1.bf16.msra.mxu0 0
        %737 = vmatprep.subr.bf16.mxu0 0
        %738 = vmatpush1.bf16.msra.mxu0 0
        %739 = vmatprep.subr.bf16.mxu0 0
        %740 = vmatpush1.bf16.msra.mxu0 0
        %741 = vmatprep.subr.bf16.mxu0 0
        %742 = vmatpush1.bf16.msra.mxu0 0
        %743 = vmatprep.mubr.bf16.mxu0 0
        %744 = vmatmul.mubr.bf16.gmra.mrb[0].mxu0 %v639
        %v745 = vpop.f32.mrb[0].mxu0
        %v746 = vadd.f32 %v661, %v745
        %v747 = vpop.f32.mrb[0].mxu0
        %v748 = vpop.f32.mrb[0].mxu0
        %v749 = vadd.f32 %v661, %v748
        %v750 = vpop.f32.mrb[0].mxu0
        %751 = vdwg.mxu0
        %752 = vst [vmem:[%s389] sm:$0xff] %v746
        %753 = vst [vmem:[%s389 + $0x8] sm:$0xff] %v749
        %s754 = sand.u32 %s212, 1
        %s755 = scalar_lea.sflag [#allocation5], %s754
        %s756 = sand.u32 %s212, 1
        %s757 = smul.addr %s756, 16
        %s758 = scalar_lea.vmem [#allocation11], %s757
        // Predicated region
        $region69: #{tpu_custom_call.1} parent=47 // pred_check
          %p759 = pneg %p222
        $region70: #{tpu_custom_call.1} parent=47 // pred_check_branch
          %761 = sbr.rel (%p759) target = $region72
        $region71: #{tpu_custom_call.1} parent=47 // pred_region
          %s762 = smul.u32 2, %s32
          %s764 = ssub.s32 256, 256
          %765 = vsyncadd %s755, %s764
          %s766 = smul.addr %s762, 2
          %s767 = sadd.s32 %s33, %s766
          %s768 = smul.addr %s767, 128
          %s769 = scalar_lea.hbm %s7, %s768
          %s770 = sshll.u32 %s758, 4
          %s771 = int_to_ptr.vmem [resolvable:$true] %s770
          %776 = dma.vmem_to_hbm [thread:$0]  %s771, 256, %s769, %s755, 128, 256, 8
        $region72: #{tpu_custom_call.1} parent=47 // pred_fallthru
          _
      $region48: #{tpu_custom_call.1} parent=5 // pred_fallthru
        _
      %p777 = scmp.le.s32.totalorder 2, %s23
      // Predicated region
      $region73: #{tpu_custom_call.1} parent=5 // pred_check
        %p778 = pneg %p777
      $region74: #{tpu_custom_call.1} parent=5 // pred_check_branch
        %780 = sbr.rel (%p778) target = $region76
      $region75: #{tpu_custom_call.1} parent=5 // pred_region
        %s781 = ssub.s32 %s23, 2
        // Predicated region
        $region77: #{tpu_custom_call.1} parent=75 // pred_check
          %p782 = pneg %p228
        $region78: #{tpu_custom_call.1} parent=75 // pred_check_branch
          %784 = sbr.rel (%p782) target = $region80
        $region79: #{tpu_custom_call.1} parent=75 // pred_region
          %s785 = sand.u32 %s213, 1
          %s786 = scalar_lea.sflag [#allocation5], %s785
          %s787 = sand.u32 %s213, 1
          %s788 = smul.addr %s787, 16
          %s789 = scalar_lea.vmem [#allocation11], %s788
          %790 = dma.done %s786, 256
        $region80: #{tpu_custom_call.1} parent=75 // pred_fallthru
          _
      $region76: #{tpu_custom_call.1} parent=5 // pred_fallthru
        _
    $region6: #{tpu_custom_call.1} parent=1 // loop_footer
      %s27 = sadd.s32 1, %s23
    $region7: #{tpu_custom_call.1} parent=1 // loop_footer_branch
      %22 = sbr.rel target = $region3
    $region8: #{tpu_custom_call.1} parent=1 // loop_exit
      _
    %791 = vsyncpa [#allocation4], 1
    %s792 = scalar_lea.sflag [#allocation4], 1
    %793 = vsyncpa %s792, 1
    %794 = vsyncpa [#allocation7], 1
    %795 = vsyncpa [#allocation10], 1
    %s796 = scalar_lea.sflag [#allocation10], 1
    %797 = vsyncpa %s796, 1
    %798 = vsyncpa [#allocation5], 1
    %s799 = scalar_lea.sflag [#allocation5], 1
    %800 = vsyncpa %s799, 1

// kernel: tpu_custom_call.1
$region0: #{tpu_custom_call.1}
  #allocation0 [shape = 'u32[]', space=smem, size = 0x4, offset = 0x4, fixed_abs, tag = 'smem constant byte address 0x4 - core index']
  #allocation1 [shape = 'u32[144,128]{1,0:T(1,128)}', space=vmem, size = 0x12000, scoped, tag = 'internal scratch']
  #allocation2 [shape = 'bf16[16,128]{1,0:T(16,128)(2,1)}', space=vmem, size = 0x1000, scoped, tag = 'scratch operand']
  %s0 = inlined_call_operand.hbm [shape: bf16[48,128], index: 0, kind: input, shape index: {}]
  %s1 = inlined_call_operand.hbm [shape: bf16[128,128], index: 1, kind: input, shape index: {}]
  %s2 = inlined_call_operand.vmem [shape: f32[1,128], index: 2, kind: input, shape index: {}]
  %s3 = inlined_call_operand.hbm [shape: bf16[128,128], index: 3, kind: input, shape index: {}]
  %s4 = inlined_call_operand.vmem [shape: f32[1,128], index: 4, kind: input, shape index: {}]
  %s5 = inlined_call_operand.hbm [shape: bf16[128,256], index: 5, kind: input, shape index: {}]
  %s6 = inlined_call_operand.vmem [shape: f32[1,256], index: 6, kind: input, shape index: {}]
  %s7 = inlined_call_operand.hbm [shape: f32[48,256], index: 7, kind: output, shape index: {}]
  %s8 = sld [smem:[#allocation0]]
  $region81: #{tpu_custom_call.1} parent=0
    _
  %s10 = ssub.s32 1, %s8
  %s11 = scalar_select 0, %s10, %s8
  $region1: #{tpu_custom_call.1} parent=0
    #allocation3 [shape = 'u8[8192]{0}', space=vmem, size = 0x2000, scoped, tag = 'input window, operand 0']
    #allocation4 [shape = 's32[2]{0}', space=sflag, size = 0x8, scoped, tag = 'scoped memory for tpu_custom_call.1']
    #allocation5 [shape = 's32[2]{0}', space=sflag, size = 0x8, scoped, tag = 'scoped memory for tpu_custom_call.1']
    #allocation6 [shape = 'u8[32768]{0}', space=vmem, size = 0x8000, scoped, tag = 'input window, operand 1, single buffered']
    #allocation7 [shape = 's32[1]{0}', space=sflag, size = 0x4, scoped, tag = 'scoped memory for tpu_custom_call.1']
    #allocation8 [shape = 'u8[32768]{0}', space=vmem, size = 0x8000, scoped, tag = 'input window, operand 3, single buffered']
    #allocation9 [shape = 'u8[65536]{0}', space=vmem, size = 0x10000, scoped, tag = 'input window, operand 5']
    #allocation10 [shape = 's32[2]{0}', space=sflag, size = 0x8, scoped, tag = 'scoped memory for tpu_custom_call.1']
    #allocation11 [shape = 'u8[16384]{0}', space=vmem, size = 0x4000, scoped, tag = 'output window, operand 0']
    %12 = vsyncpa [#allocation4], 0
    %s13 = scalar_lea.sflag [#allocation4], 1
    %14 = vsyncpa %s13, 0
    %15 = vsyncpa [#allocation7], 0
    %16 = vsyncpa [#allocation10], 0
    %s17 = scalar_lea.sflag [#allocation10], 1
    %18 = vsyncpa %s17, 0
    %19 = vsyncpa [#allocation5], 0
    %s20 = scalar_lea.sflag [#allocation5], 1
    %21 = vsyncpa %s20, 0
    loop: start=0, step=1, limit=8
    $region2: #{tpu_custom_call.1} parent=1 // loop_pre_header
      _
    $region3: #{tpu_custom_call.1} parent=1 // loop_header
      %s23 = sphi 0, %s27
      %p24 = scmp.ge.s32.totalorder %s23, 8
      %s30 = sphi 0, %s42
      %s31 = sphi 0, %s38
      %s32 = sphi 0, %s30
      %s33 = sphi 0, %s31
      %s34 = sphi 0, %s32
      %s35 = sphi 0, %s33
      %s45 = sphi 0, %s47
      %s48 = sphi 0, %s45
      %s49 = sphi 0, %s48
      %s65 = sphi 0, %s49
      %s69 = sphi 0, %s69
      %s71 = sphi 0, %s69
      %s72 = sphi 0, %s71
      %s86 = sphi 0, %s72
      %s90 = sphi 0, %s90
      %s92 = sphi 0, %s90
      %s93 = sphi 0, %s92
      %s107 = sphi 0, %s93
      %s111 = sphi 0, %s111
      %s113 = sphi 0, %s111
      %s114 = sphi 0, %s113
      %s128 = sphi 0, %s114
      %s132 = sphi 0, %s132
      %s134 = sphi 0, %s132
      %s135 = sphi 0, %s134
      %s149 = sphi 0, %s135
      %s155 = sphi 0, %s157
      %s158 = sphi 0, %s155
      %s159 = sphi 0, %s158
      %s175 = sphi 0, %s159
      %s181 = sphi 0, %s183
      %s184 = sphi 0, %s181
      %s185 = sphi 0, %s184
      %s201 = sphi 0, %s185
      %s209 = sphi 0, %s211
      %s212 = sphi 0, %s209
      %s213 = sphi 0, %s212
      %s229 = sphi 0, %s213
    $region4: #{tpu_custom_call.1} parent=1 // loop_header_branch
      %26 = sbr.rel (%p24) target = $region8
    $region5: #{tpu_custom_call.1} parent=1 // loop_body
      %s28 = ssub.s32 %s23, 1
      %s29 = ssub.s32 %s23, 2
      %s36 = sadd.s32 1, %s31
      %p37 = scmp.ge.s32.totalorder %s36, 2
      %s38 = scalar_select %p37, 0, %s36
      %s39 = sadd.s32 1, %s30
      %s40 = scalar_select %p37, %s39, %s30
      %p41 = scmp.ge.s32.totalorder %s40, 3
      %s42 = scalar_select %p41, 0, %s40
      %s43 = ssub.s32 %s30, %s42
      %p44 = scmp.eq.s32.totalorder %s43, 0
      %s46 = sadd.s32 %s45, 1
      %s47 = scalar_select %p44, %s45, %s46
      %p50 = pneg %p44
      %p51 = scmp.eq.s32.totalorder %s23, 5
      %p52 = por %p50, %p51
      %p53 = scmp.ne.s32.totalorder %s45, %s48
      %p54 = scmp.eq.s32.totalorder %s23, 0
      %p55 = por %p53, %p54
      %p56 = scmp.ne.s32.totalorder %s45, %s48
      %p57 = scmp.eq.s32.totalorder %s28, 5
      %p58 = por %p56, %p57
      %p59 = scmp.ne.s32.totalorder %s48, %s49
      %p60 = scmp.eq.s32.totalorder %s28, 0
      %p61 = por %p59, %p60
      %p62 = scmp.ne.s32.totalorder %s48, %s49
      %p63 = scmp.eq.s32.totalorder %s29, 5
      %p64 = por %p62, %p63
      %p66 = scmp.ne.s32.totalorder %s49, %s65
      %p67 = scmp.eq.s32.totalorder %s29, 0
      %p68 = por %p66, %p67
      %s70 = sadd.s32 %s69, 1
      %p73 = scmp.eq.s32.totalorder %s23, 5
      %p74 = scmp.ne.s32.totalorder %s69, %s71
      %p75 = scmp.eq.s32.totalorder %s23, 0
      %p76 = por %p74, %p75
      %p77 = scmp.ne.s32.totalorder %s69, %s71
      %p78 = scmp.eq.s32.totalorder %s28, 5
      %p79 = por %p77, %p78
      %p80 = scmp.ne.s32.totalorder %s71, %s72
      %p81 = scmp.eq.s32.totalorder %s28, 0
      %p82 = por %p80, %p81
      %p83 = scmp.ne.s32.totalorder %s71, %s72
      %p84 = scmp.eq.s32.totalorder %s29, 5
      %p85 = por %p83, %p84
      %p87 = scmp.ne.s32.totalorder %s72, %s86
      %p88 = scmp.eq.s32.totalorder %s29, 0
      %p89 = por %p87, %p88
      %s91 = sadd.s32 %s90, 1
      %p94 = scmp.eq.s32.totalorder %s23, 5
      %p95 = scmp.ne.s32.totalorder %s90, %s92
      %p96 = scmp.eq.s32.totalorder %s23, 0
      %p97 = por %p95, %p96
      %p98 = scmp.ne.s32.totalorder %s90, %s92
      %p99 = scmp.eq.s32.totalorder %s28, 5
      %p100 = por %p98, %p99
      %p101 = scmp.ne.s32.totalorder %s92, %s93
      %p102 = scmp.eq.s32.totalorder %s28, 0
      %p103 = por %p101, %p102
      %p104 = scmp.ne.s32.totalorder %s92, %s93
      %p105 = scmp.eq.s32.totalorder %s29, 5
      %p106 = por %p104, %p105
      %p108 = scmp.ne.s32.totalorder %s93, %s107
      %p109 = scmp.eq.s32.totalorder %s29, 0
      %p110 = por %p108, %p109
      %s112 = sadd.s32 %s111, 1
      %p115 = scmp.eq.s32.totalorder %s23, 5
      %p116 = scmp.ne.s32.totalorder %s111, %s113
      %p117 = scmp.eq.s32.totalorder %s23, 0
      %p118 = por %p116, %p117
      %p119 = scmp.ne.s32.totalorder %s111, %s113
      %p120 = scmp.eq.s32.totalorder %s28, 5
      %p121 = por %p119, %p120
      %p122 = scmp.ne.s32.totalorder %s113, %s114
      %p123 = scmp.eq.s32.totalorder %s28, 0
      %p124 = por %p122, %p123
      %p125 = scmp.ne.s32.totalorder %s113, %s114
      %p126 = scmp.eq.s32.totalorder %s29, 5
      %p127 = por %p125, %p126
      %p129 = scmp.ne.s32.totalorder %s114, %s128
      %p130 = scmp.eq.s32.totalorder %s29, 0
      %p131 = por %p129, %p130
      %s133 = sadd.s32 %s132, 1
      %p136 = scmp.eq.s32.totalorder %s23, 5
      %p137 = scmp.ne.s32.totalorder %s132, %s134
      %p138 = scmp.eq.s32.totalorder %s23, 0
      %p139 = por %p137, %p138
      %p140 = scmp.ne.s32.totalorder %s132, %s134
      %p141 = scmp.eq.s32.totalorder %s28, 5
      %p142 = por %p140, %p141
      %p143 = scmp.ne.s32.totalorder %s134, %s135
      %p144 = scmp.eq.s32.totalorder %s28, 0
      %p145 = por %p143, %p144
      %p146 = scmp.ne.s32.totalorder %s134, %s135
      %p147 = scmp.eq.s32.totalorder %s29, 5
      %p148 = por %p146, %p147
      %p150 = scmp.ne.s32.totalorder %s135, %s149
      %p151 = scmp.eq.s32.totalorder %s29, 0
      %p152 = por %p150, %p151
      %s153 = ssub.s32 %s31, %s38
      %p154 = scmp.eq.s32.totalorder %s153, 0
      %s156 = sadd.s32 %s155, 1
      %s157 = scalar_select %p154, %s155, %s156
      %p160 = pneg %p154
      %p161 = scmp.eq.s32.totalorder %s23, 5
      %p162 = por %p160, %p161
      %p163 = scmp.ne.s32.totalorder %s155, %s158
      %p164 = scmp.eq.s32.totalorder %s23, 0
      %p165 = por %p163, %p164
      %p166 = scmp.ne.s32.totalorder %s155, %s158
      %p167 = scmp.eq.s32.totalorder %s28, 5
      %p168 = por %p166, %p167
      %p169 = scmp.ne.s32.totalorder %s158, %s159
      %p170 = scmp.eq.s32.totalorder %s28, 0
      %p171 = por %p169, %p170
      %p172 = scmp.ne.s32.totalorder %s158, %s159
      %p173 = scmp.eq.s32.totalorder %s29, 5
      %p174 = por %p172, %p173
      %p176 = scmp.ne.s32.totalorder %s159, %s175
      %p177 = scmp.eq.s32.totalorder %s29, 0
      %p178 = por %p176, %p177
      %s179 = ssub.s32 %s31, %s38
      %p180 = scmp.eq.s32.totalorder %s179, 0
      %s182 = sadd.s32 %s181, 1
      %s183 = scalar_select %p180, %s181, %s182
      %p186 = pneg %p180
      %p187 = scmp.eq.s32.totalorder %s23, 5
      %p188 = por %p186, %p187
      %p189 = scmp.ne.s32.totalorder %s181, %s184
      %p190 = scmp.eq.s32.totalorder %s23, 0
      %p191 = por %p189, %p190
      %p192 = scmp.ne.s32.totalorder %s181, %s184
      %p193 = scmp.eq.s32.totalorder %s28, 5
      %p194 = por %p192, %p193
      %p195 = scmp.ne.s32.totalorder %s184, %s185
      %p196 = scmp.eq.s32.totalorder %s28, 0
      %p197 = por %p195, %p196
      %p198 = scmp.ne.s32.totalorder %s184, %s185
      %p199 = scmp.eq.s32.totalorder %s29, 5
      %p200 = por %p198, %p199
      %p202 = scmp.ne.s32.totalorder %s185, %s201
      %p203 = scmp.eq.s32.totalorder %s29, 0
      %p204 = por %p202, %p203
      %s205 = ssub.s32 %s30, %s42
      %s206 = ssub.s32 %s31, %s38
      %s207 = sor.u32 %s205, %s206
      %p208 = scmp.eq.s32.totalorder %s207, 0
      %s210 = sadd.s32 %s209, 1
      %s211 = scalar_select %p208, %s209, %s210
      %p214 = pneg %p208
      %p215 = scmp.eq.s32.totalorder %s23, 5
      %p216 = por %p214, %p215
      %p217 = scmp.ne.s32.totalorder %s209, %s212
      %p218 = scmp.eq.s32.totalorder %s23, 0
      %p219 = por %p217, %p218
      %p220 = scmp.ne.s32.totalorder %s209, %s212
      %p221 = scmp.eq.s32.totalorder %s28, 5
      %p222 = por %p220, %p221
      %p223 = scmp.ne.s32.totalorder %s212, %s213
      %p224 = scmp.eq.s32.totalorder %s28, 0
      %p225 = por %p223, %p224
      %p226 = scmp.ne.s32.totalorder %s212, %s213
      %p227 = scmp.eq.s32.totalorder %s29, 5
      %p228 = por %p226, %p227
      %p230 = scmp.ne.s32.totalorder %s213, %s229
      %p231 = scmp.eq.s32.totalorder %s29, 0
      %p232 = por %p230, %p231
      %p233 = scmp.le.s32.totalorder 1, %s23
      %p234 = scmp.lt.s32.totalorder %s23, 7
      %p235 = pnand %p233, %p234
      %p236 = pneg %p235
      // Predicated region
      $region9: #{tpu_custom_call.1} parent=5 // pred_check
        _
      $region10: #{tpu_custom_call.1} parent=5 // pred_check_branch
        %238 = sbr.rel (%p235) target = $region12
      $region11: #{tpu_custom_call.1} parent=5 // pred_region
        %s239 = ssub.s32 %s23, 1
        // Predicated region
        $region13: #{tpu_custom_call.1} parent=11 // pred_check
          %p240 = pneg %p82
        $region14: #{tpu_custom_call.1} parent=11 // pred_check_branch
          %242 = sbr.rel (%p240) target = $region16
        $region15: #{tpu_custom_call.1} parent=11 // pred_region
          %s244 = ssub.s32 1024, 1024
          %245 = vsyncadd [#allocation7], %s244
          %s246 = sshll.u32 [#allocation6], 4
          %s247 = int_to_ptr.vmem [resolvable:$true] %s246
          %252 = dma.hbm_to_vmem [thread:$0]  %s1, 1024, %s247, [#allocation7], 64, 64, 4
        $region16: #{tpu_custom_call.1} parent=11 // pred_fallthru
          _
        // Predicated region
        $region17: #{tpu_custom_call.1} parent=11 // pred_check
          %p253 = pneg %p103
        $region18: #{tpu_custom_call.1} parent=11 // pred_check_branch
          %255 = sbr.rel (%p253) target = $region20
        $region19: #{tpu_custom_call.1} parent=11 // pred_region
          _
        $region20: #{tpu_custom_call.1} parent=11 // pred_fallthru
          _
        // Predicated region
        $region21: #{tpu_custom_call.1} parent=11 // pred_check
          %p256 = pneg %p124
        $region22: #{tpu_custom_call.1} parent=11 // pred_check_branch
          %258 = sbr.rel (%p256) target = $region24
        $region23: #{tpu_custom_call.1} parent=11 // pred_region
          %s260 = ssub.s32 1024, 1024
          %261 = vsyncadd [#allocation7], %s260
          %s262 = sshll.u32 [#allocation8], 4
          %s263 = int_to_ptr.vmem [resolvable:$true] %s262
          %268 = dma.hbm_to_vmem [thread:$0]  %s3, 1024, %s263, [#allocation7], 64, 64, 4
        $region24: #{tpu_custom_call.1} parent=11 // pred_fallthru
          _
        // Predicated region
        $region25: #{tpu_custom_call.1} parent=11 // pred_check
          %p269 = pneg %p145
        $region26: #{tpu_custom_call.1} parent=11 // pred_check_branch
          %271 = sbr.rel (%p269) target = $region28
        $region27: #{tpu_custom_call.1} parent=11 // pred_region
          _
        $region28: #{tpu_custom_call.1} parent=11 // pred_fallthru
          _
      $region12: #{tpu_custom_call.1} parent=5 // pred_fallthru
        _
      %p272 = scmp.lt.s32.totalorder %s23, 6
      // Predicated region
      $region29: #{tpu_custom_call.1} parent=5 // pred_check
        %p273 = pneg %p272
      $region30: #{tpu_custom_call.1} parent=5 // pred_check_branch
        %275 = sbr.rel (%p273) target = $region32
      $region31: #{tpu_custom_call.1} parent=5 // pred_region
        // Predicated region
        $region33: #{tpu_custom_call.1} parent=31 // pred_check
          %p276 = pneg %p55
        $region34: #{tpu_custom_call.1} parent=31 // pred_check_branch
          %278 = sbr.rel (%p276) target = $region36
        $region35: #{tpu_custom_call.1} parent=31 // pred_region
          %s279 = sand.u32 %s45, 1
          %s280 = scalar_lea.sflag [#allocation4], %s279
          %s281 = sand.u32 %s45, 1
          %s282 = smul.addr %s281, 8
          %s283 = scalar_lea.vmem [#allocation3], %s282
          %s284 = smul.u32 2, %s30
          %s286 = ssub.s32 128, 128
          %287 = vsyncadd %s280, %s286
          %s288 = smul.addr %s284, 64
          %s289 = scalar_lea.hbm %s0, %s288
          %s290 = sshll.u32 %s283, 4
          %s291 = int_to_ptr.vmem [resolvable:$true] %s290
          %296 = dma.hbm_to_vmem [thread:$0]  %s289, 128, %s291, %s280, 64, 64, 4
        $region36: #{tpu_custom_call.1} parent=31 // pred_fallthru
          _
        // Predicated region
        $region37: #{tpu_custom_call.1} parent=31 // pred_check
          %p297 = pneg %p165
        $region38: #{tpu_custom_call.1} parent=31 // pred_check_branch
          %299 = sbr.rel (%p297) target = $region40
        $region39: #{tpu_custom_call.1} parent=31 // pred_region
          %s300 = sand.u32 %s155, 1
          %s301 = scalar_lea.sflag [#allocation10], %s300
          %s302 = sand.u32 %s155, 1
          %s303 = smul.addr %s302, 64
          %s304 = scalar_lea.vmem [#allocation9], %s303
          %s306 = ssub.s32 1024, 1024
          %307 = vsyncadd %s301, %s306
          %s308 = smul.addr %s31, 64
          %s309 = scalar_lea.hbm %s5, %s308
          %s310 = sshll.u32 %s304, 4
          %s311 = int_to_ptr.vmem [resolvable:$true] %s310
          %316 = dma.hbm_to_vmem [thread:$0]  %s309, 1024, %s311, %s301, 128, 64, 4
        $region40: #{tpu_custom_call.1} parent=31 // pred_fallthru
          _
        // Predicated region
        $region41: #{tpu_custom_call.1} parent=31 // pred_check
          %p317 = pneg %p191
        $region42: #{tpu_custom_call.1} parent=31 // pred_check_branch
          %319 = sbr.rel (%p317) target = $region44
        $region43: #{tpu_custom_call.1} parent=31 // pred_region
          %p320 = scmp.lt.s32.totalorder %s31, 1
          %s321 = scalar_select %p320, %s31, 1
          %s322 = scalar_lea.vmem %s6, %s321
        $region44: #{tpu_custom_call.1} parent=31 // pred_fallthru
          _
      $region32: #{tpu_custom_call.1} parent=5 // pred_fallthru
        _
      %p323 = scmp.le.s32.totalorder 1, %s23
      %p324 = scmp.lt.s32.totalorder %s23, 7
      %p325 = pnand %p323, %p324
      %p326 = pneg %p325
      // Predicated region
      $region45: #{tpu_custom_call.1} parent=5 // pred_check
        _
      $region46: #{tpu_custom_call.1} parent=5 // pred_check_branch
        %328 = sbr.rel (%p325) target = $region48
      $region47: #{tpu_custom_call.1} parent=5 // pred_region
        %s329 = ssub.s32 %s23, 1
        %s330 = sand.u32 %s48, 1
        %s331 = scalar_lea.sflag [#allocation4], %s330
        %s332 = sand.u32 %s48, 1
        %s333 = smul.addr %s332, 8
        %s334 = scalar_lea.vmem [#allocation3], %s333
        // Predicated region
        $region49: #{tpu_custom_call.1} parent=47 // pred_check
          %p335 = pneg %p61
        $region50: #{tpu_custom_call.1} parent=47 // pred_check_branch
          %337 = sbr.rel (%p335) target = $region52
        $region51: #{tpu_custom_call.1} parent=47 // pred_region
          %338 = dma.done %s331, 128
        $region52: #{tpu_custom_call.1} parent=47 // pred_fallthru
          _
        // Predicated region
        $region53: #{tpu_custom_call.1} parent=47 // pred_check
          %p339 = pneg %p82
        $region54: #{tpu_custom_call.1} parent=47 // pred_check_branch
          %341 = sbr.rel (%p339) target = $region56
        $region55: #{tpu_custom_call.1} parent=47 // pred_region
          %342 = dma.done [#allocation7], 1024
        $region56: #{tpu_custom_call.1} parent=47 // pred_fallthru
          _
        // Predicated region
        $region57: #{tpu_custom_call.1} parent=47 // pred_check
          %p343 = pneg %p124
        $region58: #{tpu_custom_call.1} parent=47 // pred_check_branch
          %345 = sbr.rel (%p343) target = $region60
        $region59: #{tpu_custom_call.1} parent=47 // pred_region
          %346 = dma.done [#allocation7], 1024
        $region60: #{tpu_custom_call.1} parent=47 // pred_fallthru
          _
        %s347 = sand.u32 %s158, 1
        %s348 = scalar_lea.sflag [#allocation10], %s347
        %s349 = sand.u32 %s158, 1
        %s350 = smul.addr %s349, 64
        %s351 = scalar_lea.vmem [#allocation9], %s350
        // Predicated region
        $region61: #{tpu_custom_call.1} parent=47 // pred_check
          %p352 = pneg %p171
        $region62: #{tpu_custom_call.1} parent=47 // pred_check_branch
          %354 = sbr.rel (%p352) target = $region64
        $region63: #{tpu_custom_call.1} parent=47 // pred_region
          %355 = dma.done %s348, 1024
        $region64: #{tpu_custom_call.1} parent=47 // pred_fallthru
          _
        %s356 = sand.u32 %s48, 1
        %s357 = scalar_lea.sflag [#allocation4], %s356
        %s358 = sand.u32 %s48, 1
        %s359 = smul.addr %s358, 8
        %s360 = scalar_lea.vmem [#allocation3], %s359
        %p361 = pneg %p61
        %p362 = pneg %p58
        %p363 = pneg %p82
        %p364 = pneg %p79
        %p365 = pneg %p103
        %p366 = pneg %p100
        %p367 = pneg %p124
        %p368 = pneg %p121
        %p369 = pneg %p145
        %p370 = pneg %p142
        %s371 = sand.u32 %s158, 1
        %s372 = scalar_lea.sflag [#allocation10], %s371
        %s373 = sand.u32 %s158, 1
        %s374 = smul.addr %s373, 64
        %s375 = scalar_lea.vmem [#allocation9], %s374
        %p376 = pneg %p171
        %p377 = pneg %p168
        %p378 = scmp.lt.s32.totalorder %s33, 1
        %s379 = scalar_select %p378, %s33, 1
        %s380 = scalar_lea.vmem %s6, %s379
        %p381 = pneg %p197
        %p382 = pneg %p194
        %p383 = pneg %p225
        %p384 = pneg %p222
        %s385 = sand.u32 %s212, 1
        %s386 = scalar_lea.sflag [#allocation5], %s385
        %s387 = sand.u32 %s212, 1
        %s388 = smul.addr %s387, 16
        %s389 = scalar_lea.vmem [#allocation11], %s388
        %s390 = smul.u32 2, %s32
        %p391 = scmp.lt.s32.totalorder %s33, 1
        %s392 = scalar_select %p391, %s33, 1
        %s393 = scalar_lea.vmem %s6, %s392
        %s394 = smul.u32 2, %s32
        %p396 = scmp.eq.s32.totalorder %s33, 0
        // Predicated region
        $region65: #{tpu_custom_call.1} parent=47 // pred_check
          %p397 = pneg %p396
        $region66: #{tpu_custom_call.1} parent=47 // pred_check_branch
          %399 = sbr.rel (%p397) target = $region68
        $region67: #{tpu_custom_call.1} parent=47 // pred_region
          %v400 = vld [vmem:[%s334] sm:$0xf]
          %v401 = vld [vmem:[%s334 + $0x4] sm:$0xf]
          %v402 = vld [vmem:[#allocation6] sm:$0xf]
          %v403 = vld [vmem:[#allocation6 + $0x4] sm:$0xf]
          %v404 = vld [vmem:[#allocation6 + $0x8] sm:$0xf]
          %v405 = vld [vmem:[#allocation6 + $0xc] sm:$0xf]
          %v406 = vld [vmem:[#allocation6 + $0x10] sm:$0xf]
          %v407 = vld [vmem:[#allocation6 + $0x14] sm:$0xf]
          %v408 = vld [vmem:[#allocation6 + $0x18] sm:$0xf]
          %v409 = vld [vmem:[#allocation6 + $0x1c] sm:$0xf]
          %v410 = vld [vmem:[#allocation6 + $0x20] sm:$0xf]
          %v411 = vld [vmem:[#allocation6 + $0x24] sm:$0xf]
          %v412 = vld [vmem:[#allocation6 + $0x28] sm:$0xf]
          %v413 = vld [vmem:[#allocation6 + $0x2c] sm:$0xf]
          %v414 = vld [vmem:[#allocation6 + $0x30] sm:$0xf]
          %v415 = vld [vmem:[#allocation6 + $0x34] sm:$0xf]
          %v416 = vld [vmem:[#allocation6 + $0x38] sm:$0xf]
          %v417 = vld [vmem:[#allocation6 + $0x3c] sm:$0xf]
          %v418 = vld [vmem:[%s2] sm:$0x1]
          %v420 = vlaneseq
          %v421 = vshrl.u32 %v420, 7
          %v422 = vsub.s32 0, %v421
          %v423 = vrot.slane %v418, %v422
          %v427 = vunpack.c.l.b16 %v400
          %v428 = vunpack.c.l.b16 %v401
          %v429 = vpack.c.b16 %v428, %v427
          %v447 = vunpack.c.l.b16 %v402
          %v448 = vunpack.c.l.b16 %v403
          %v449 = vunpack.c.l.b16 %v404
          %v450 = vunpack.c.l.b16 %v405
          %v451 = vunpack.c.l.b16 %v406
          %v452 = vunpack.c.l.b16 %v407
          %v453 = vunpack.c.l.b16 %v408
          %v454 = vunpack.c.l.b16 %v409
          %v455 = vunpack.c.l.b16 %v410
          %v456 = vunpack.c.l.b16 %v411
          %v457 = vunpack.c.l.b16 %v412
          %v458 = vunpack.c.l.b16 %v413
          %v459 = vunpack.c.l.b16 %v414
          %v460 = vunpack.c.l.b16 %v415
          %v461 = vunpack.c.l.b16 %v416
          %v462 = vunpack.c.l.b16 %v417
          %v463 = vpack.c.b16 %v448, %v447
          %v464 = vpack.c.b16 %v450, %v449
          %v465 = vpack.c.b16 %v452, %v451
          %v466 = vpack.c.b16 %v454, %v453
          %v467 = vpack.c.b16 %v456, %v455
          %v468 = vpack.c.b16 %v458, %v457
          %v469 = vpack.c.b16 %v460, %v459
          %v470 = vpack.c.b16 %v462, %v461
          %479 = vmatprep.subr.bf16.mxu0 0
          %480 = vmatpush1.bf16.msra.mxu0 %v463
          %481 = vmatprep.subr.bf16.mxu0 0
          %482 = vmatpush1.bf16.msra.mxu0 %v464
          %483 = vmatprep.subr.bf16.mxu0 0
          %484 = vmatpush1.bf16.msra.mxu0 %v465
          %485 = vmatprep.subr.bf16.mxu0 0
          %486 = vmatpush1.bf16.msra.mxu0 %v466
          %487 = vmatprep.subr.bf16.mxu0 0
          %488 = vmatpush1.bf16.msra.mxu0 %v467
          %489 = vmatprep.subr.bf16.mxu0 0
          %490 = vmatpush1.bf16.msra.mxu0 %v468
          %491 = vmatprep.subr.bf16.mxu0 0
          %492 = vmatpush1.bf16.msra.mxu0 %v469
          %493 = vmatprep.subr.bf16.mxu0 0
          %494 = vmatpush1.bf16.msra.mxu0 %v470
          %495 = vmatprep.subr.bf16.mxu0 0
          %496 = vmatpush1.bf16.msra.mxu0 0
          %497 = vmatprep.subr.bf16.mxu0 0
          %498 = vmatpush1.bf16.msra.mxu0 0
          %499 = vmatprep.subr.bf16.mxu0 0
          %500 = vmatpush1.bf16.msra.mxu0 0
          %501 = vmatprep.subr.bf16.mxu0 0
          %502 = vmatpush1.bf16.msra.mxu0 0
          %503 = vmatprep.subr.bf16.mxu0 0
          %504 = vmatpush1.bf16.msra.mxu0 0
          %505 = vmatprep.subr.bf16.mxu0 0
          %506 = vmatpush1.bf16.msra.mxu0 0
          %507 = vmatprep.subr.bf16.mxu0 0
          %508 = vmatpush1.bf16.msra.mxu0 0
          %509 = vmatprep.subr.bf16.mxu0 0
          %510 = vmatpush1.bf16.msra.mxu0 0
          %511 = vmatprep.mubr.bf16.mxu0 0
          %512 = vmatmul.mubr.bf16.gmra.mrb[0].mxu0 %v429
          %v513 = vpop.f32.mrb[0].mxu0
          %v514 = vadd.f32 %v423, %v513
          %v515 = vpop.f32.mrb[0].mxu0
          %v516 = vpop.f32.mrb[0].mxu0
          %v517 = vadd.f32 %v423, %v516
          %v518 = vpop.f32.mrb[0].mxu0
          %519 = vdwg.mxu0
          %v520 = vmax.f32 %v514, 0.0
          %v521 = vmax.f32 %v517, 0.0
          %v522 = vpack.c.bf16 %v521, %v520
          %v523 = vld [vmem:[#allocation8] sm:$0xf]
          %v524 = vld [vmem:[#allocation8 + $0x4] sm:$0xf]
          %v525 = vld [vmem:[#allocation8 + $0x8] sm:$0xf]
          %v526 = vld [vmem:[#allocation8 + $0xc] sm:$0xf]
          %v527 = vld [vmem:[#allocation8 + $0x10] sm:$0xf]
          %v528 = vld [vmem:[#allocation8 + $0x14] sm:$0xf]
          %v529 = vld [vmem:[#allocation8 + $0x18] sm:$0xf]
          %v530 = vld [vmem:[#allocation8 + $0x1c] sm:$0xf]
          %v531 = vld [vmem:[#allocation8 + $0x20] sm:$0xf]
          %v532 = vld [vmem:[#allocation8 + $0x24] sm:$0xf]
          %v533 = vld [vmem:[#allocation8 + $0x28] sm:$0xf]
          %v534 = vld [vmem:[#allocation8 + $0x2c] sm:$0xf]
          %v535 = vld [vmem:[#allocation8 + $0x30] sm:$0xf]
          %v536 = vld [vmem:[#allocation8 + $0x34] sm:$0xf]
          %v537 = vld [vmem:[#allocation8 + $0x38] sm:$0xf]
          %v538 = vld [vmem:[#allocation8 + $0x3c] sm:$0xf]
          %v539 = vld [vmem:[%s4] sm:$0x1]
          %v541 = vlaneseq
          %v542 = vshrl.u32 %v541, 7
          %v543 = vsub.s32 0, %v542
          %v544 = vrot.slane %v539, %v543
          %v562 = vunpack.c.l.b16 %v523
          %v563 = vunpack.c.l.b16 %v524
          %v564 = vunpack.c.l.b16 %v525
          %v565 = vunpack.c.l.b16 %v526
          %v566 = vunpack.c.l.b16 %v527
          %v567 = vunpack.c.l.b16 %v528
          %v568 = vunpack.c.l.b16 %v529
          %v569 = vunpack.c.l.b16 %v530
          %v570 = vunpack.c.l.b16 %v531
          %v571 = vunpack.c.l.b16 %v532
          %v572 = vunpack.c.l.b16 %v533
          %v573 = vunpack.c.l.b16 %v534
          %v574 = vunpack.c.l.b16 %v535
          %v575 = vunpack.c.l.b16 %v536
          %v576 = vunpack.c.l.b16 %v537
          %v577 = vunpack.c.l.b16 %v538
          %v578 = vpack.c.b16 %v563, %v562
          %v579 = vpack.c.b16 %v565, %v564
          %v580 = vpack.c.b16 %v567, %v566
          %v581 = vpack.c.b16 %v569, %v568
          %v582 = vpack.c.b16 %v571, %v570
          %v583 = vpack.c.b16 %v573, %v572
          %v584 = vpack.c.b16 %v575, %v574
          %v585 = vpack.c.b16 %v577, %v576
          %594 = vmatprep.subr.bf16.mxu0 0
          %595 = vmatpush1.bf16.msra.mxu0 %v578
          %596 = vmatprep.subr.bf16.mxu0 0
          %597 = vmatpush1.bf16.msra.mxu0 %v579
          %598 = vmatprep.subr.bf16.mxu0 0
          %599 = vmatpush1.bf16.msra.mxu0 %v580
          %600 = vmatprep.subr.bf16.mxu0 0
          %601 = vmatpush1.bf16.msra.mxu0 %v581
          %602 = vmatprep.subr.bf16.mxu0 0
          %603 = vmatpush1.bf16.msra.mxu0 %v582
          %604 = vmatprep.subr.bf16.mxu0 0
          %605 = vmatpush1.bf16.msra.mxu0 %v583
          %606 = vmatprep.subr.bf16.mxu0 0
          %607 = vmatpush1.bf16.msra.mxu0 %v584
          %608 = vmatprep.subr.bf16.mxu0 0
          %609 = vmatpush1.bf16.msra.mxu0 %v585
          %610 = vmatprep.subr.bf16.mxu0 0
          %611 = vmatpush1.bf16.msra.mxu0 0
          %612 = vmatprep.subr.bf16.mxu0 0
          %613 = vmatpush1.bf16.msra.mxu0 0
          %614 = vmatprep.subr.bf16.mxu0 0
          %615 = vmatpush1.bf16.msra.mxu0 0
          %616 = vmatprep.subr.bf16.mxu0 0
          %617 = vmatpush1.bf16.msra.mxu0 0
          %618 = vmatprep.subr.bf16.mxu0 0
          %619 = vmatpush1.bf16.msra.mxu0 0
          %620 = vmatprep.subr.bf16.mxu0 0
          %621 = vmatpush1.bf16.msra.mxu0 0
          %622 = vmatprep.subr.bf16.mxu0 0
          %623 = vmatpush1.bf16.msra.mxu0 0
          %624 = vmatprep.subr.bf16.mxu0 0
          %625 = vmatpush1.bf16.msra.mxu0 0
          %626 = vmatprep.mubr.bf16.mxu0 0
          %627 = vmatmul.mubr.bf16.gmra.mrb[0].mxu0 %v522
          %v628 = vpop.f32.mrb[0].mxu0
          %v629 = vadd.f32 %v544, %v628
          %v630 = vpop.f32.mrb[0].mxu0
          %v631 = vpop.f32.mrb[0].mxu0
          %v632 = vadd.f32 %v544, %v631
          %v633 = vpop.f32.mrb[0].mxu0
          %634 = vdwg.mxu0
          %v635 = vmax.f32 %v629, 0.0
          %v636 = vmax.f32 %v632, 0.0
          %v637 = vpack.c.bf16 %v636, %v635
          %638 = vst [vmem:[#allocation2] sm:$0xff] %v637
        $region68: #{tpu_custom_call.1} parent=47 // pred_fallthru
          _
        %v639 = vld [vmem:[#allocation2] sm:$0xff]
        %v640 = vld [vmem:[%s351] sm:$0xf]
        %v641 = vld [vmem:[%s351 + $0x4] sm:$0xf]
        %v642 = vld [vmem:[%s351 + $0x8] sm:$0xf]
        %v643 = vld [vmem:[%s351 + $0xc] sm:$0xf]
        %v644 = vld [vmem:[%s351 + $0x10] sm:$0xf]
        %v645 = vld [vmem:[%s351 + $0x14] sm:$0xf]
        %v646 = vld [vmem:[%s351 + $0x18] sm:$0xf]
        %v647 = vld [vmem:[%s351 + $0x1c] sm:$0xf]
        %v648 = vld [vmem:[%s351 + $0x20] sm:$0xf]
        %v649 = vld [vmem:[%s351 + $0x24] sm:$0xf]
        %v650 = vld [vmem:[%s351 + $0x28] sm:$0xf]
        %v651 = vld [vmem:[%s351 + $0x2c] sm:$0xf]
        %v652 = vld [vmem:[%s351 + $0x30] sm:$0xf]
        %v653 = vld [vmem:[%s351 + $0x34] sm:$0xf]
        %v654 = vld [vmem:[%s351 + $0x38] sm:$0xf]
        %v655 = vld [vmem:[%s351 + $0x3c] sm:$0xf]
        %v656 = vld [vmem:[%s393] sm:$0x1]
        %v658 = vlaneseq
        %v659 = vshrl.u32 %v658, 7
        %v660 = vsub.s32 0, %v659
        %v661 = vrot.slane %v656, %v660
        %v679 = vunpack.c.l.b16 %v640
        %v680 = vunpack.c.l.b16 %v641
        %v681 = vunpack.c.l.b16 %v642
        %v682 = vunpack.c.l.b16 %v643
        %v683 = vunpack.c.l.b16 %v644
        %v684 = vunpack.c.l.b16 %v645
        %v685 = vunpack.c.l.b16 %v646
        %v686 = vunpack.c.l.b16 %v647
        %v687 = vunpack.c.l.b16 %v648
        %v688 = vunpack.c.l.b16 %v649
        %v689 = vunpack.c.l.b16 %v650
        %v690 = vunpack.c.l.b16 %v651
        %v691 = vunpack.c.l.b16 %v652
        %v692 = vunpack.c.l.b16 %v653
        %v693 = vunpack.c.l.b16 %v654
        %v694 = vunpack.c.l.b16 %v655
        %v695 = vpack.c.b16 %v680, %v679
        %v696 = vpack.c.b16 %v682, %v681
        %v697 = vpack.c.b16 %v684, %v683
        %v698 = vpack.c.b16 %v686, %v685
        %v699 = vpack.c.b16 %v688, %v687
        %v700 = vpack.c.b16 %v690, %v689
        %v701 = vpack.c.b16 %v692, %v691
        %v702 = vpack.c.b16 %v694, %v693
        %711 = vmatprep.subr.bf16.mxu0 0
        %712 = vmatpush1.bf16.msra.mxu0 %v695
        %713 = vmatprep.subr.bf16.mxu0 0
        %714 = vmatpush1.bf16.msra.mxu0 %v696
        %715 = vmatprep.subr.bf16.mxu0 0
        %716 = vmatpush1.bf16.msra.mxu0 %v697
        %717 = vmatprep.subr.bf16.mxu0 0
        %718 = vmatpush1.bf16.msra.mxu0 %v698
        %719 = vmatprep.subr.bf16.mxu0 0
        %720 = vmatpush1.bf16.msra.mxu0 %v699
        %721 = vmatprep.subr.bf16.mxu0 0
        %722 = vmatpush1.bf16.msra.mxu0 %v700
        %723 = vmatprep.subr.bf16.mxu0 0
        %724 = vmatpush1.bf16.msra.mxu0 %v701
        %725 = vmatprep.subr.bf16.mxu0 0
        %726 = vmatpush1.bf16.msra.mxu0 %v702
        %727 = vmatprep.subr.bf16.mxu0 0
        %728 = vmatpush1.bf16.msra.mxu0 0
        %729 = vmatprep.subr.bf16.mxu0 0
        %730 = vmatpush1.bf16.msra.mxu0 0
        %731 = vmatprep.subr.bf16.mxu0 0
        %732 = vmatpush1.bf16.msra.mxu0 0
        %733 = vmatprep.subr.bf16.mxu0 0
        %734 = vmatpush1.bf16.msra.mxu0 0
        %735 = vmatprep.subr.bf16.mxu0 0
        %736 = vmatpush1.bf16.msra.mxu0 0
        %737 = vmatprep.subr.bf16.mxu0 0
        %738 = vmatpush1.bf16.msra.mxu0 0
        %739 = vmatprep.subr.bf16.mxu0 0
        %740 = vmatpush1.bf16.msra.mxu0 0
        %741 = vmatprep.subr.bf16.mxu0 0
        %742 = vmatpush1.bf16.msra.mxu0 0
        %743 = vmatprep.mubr.bf16.mxu0 0
        %744 = vmatmul.mubr.bf16.gmra.mrb[0].mxu0 %v639
        %v745 = vpop.f32.mrb[0].mxu0
        %v746 = vadd.f32 %v661, %v745
        %v747 = vpop.f32.mrb[0].mxu0
        %v748 = vpop.f32.mrb[0].mxu0
        %v749 = vadd.f32 %v661, %v748
        %v750 = vpop.f32.mrb[0].mxu0
        %751 = vdwg.mxu0
        %752 = vst [vmem:[%s389] sm:$0xff] %v746
        %753 = vst [vmem:[%s389 + $0x8] sm:$0xff] %v749
        %s754 = sand.u32 %s212, 1
        %s755 = scalar_lea.sflag [#allocation5], %s754
        %s756 = sand.u32 %s212, 1
        %s757 = smul.addr %s756, 16
        %s758 = scalar_lea.vmem [#allocation11], %s757
        // Predicated region
        $region69: #{tpu_custom_call.1} parent=47 // pred_check
          %p759 = pneg %p222
        $region70: #{tpu_custom_call.1} parent=47 // pred_check_branch
          %761 = sbr.rel (%p759) target = $region72
        $region71: #{tpu_custom_call.1} parent=47 // pred_region
          %s762 = smul.u32 2, %s32
          %s764 = ssub.s32 256, 256
          %765 = vsyncadd %s755, %s764
          %s766 = smul.addr %s762, 2
          %s767 = sadd.s32 %s33, %s766
          %s768 = smul.addr %s767, 128
          %s769 = scalar_lea.hbm %s7, %s768
          %s770 = sshll.u32 %s758, 4
          %s771 = int_to_ptr.vmem [resolvable:$true] %s770
          %776 = dma.vmem_to_hbm [thread:$0]  %s771, 256, %s769, %s755, 128, 256, 8
        $region72: #{tpu_custom_call.1} parent=47 // pred_fallthru
          _
      $region48: #{tpu_custom_call.1} parent=5 // pred_fallthru
        _
      %p777 = scmp.le.s32.totalorder 2, %s23
      // Predicated region
      $region73: #{tpu_custom_call.1} parent=5 // pred_check
        %p778 = pneg %p777
      $region74: #{tpu_custom_call.1} parent=5 // pred_check_branch
        %780 = sbr.rel (%p778) target = $region76
      $region75: #{tpu_custom_call.1} parent=5 // pred_region
        %s781 = ssub.s32 %s23, 2
        // Predicated region
        $region77: #{tpu_custom_call.1} parent=75 // pred_check
          %p782 = pneg %p228
        $region78: #{tpu_custom_call.1} parent=75 // pred_check_branch
          %784 = sbr.rel (%p782) target = $region80
        $region79: #{tpu_custom_call.1} parent=75 // pred_region
          %s785 = sand.u32 %s213, 1
          %s786 = scalar_lea.sflag [#allocation5], %s785
          %s787 = sand.u32 %s213, 1
          %s788 = smul.addr %s787, 16
          %s789 = scalar_lea.vmem [#allocation11], %s788
          %790 = dma.done %s786, 256
        $region80: #{tpu_custom_call.1} parent=75 // pred_fallthru
          _
      $region76: #{tpu_custom_call.1} parent=5 // pred_fallthru
        _
    $region6: #{tpu_custom_call.1} parent=1 // loop_footer
      %s27 = sadd.s32 1, %s23
    $region7: #{tpu_custom_call.1} parent=1 // loop_footer_branch
      %22 = sbr.rel target = $region3
    $region8: #{tpu_custom_call.1} parent=1 // loop_exit
      _
    %791 = vsyncpa [#allocation4], 1
    %s792 = scalar_lea.sflag [#allocation4], 1
    %793 = vsyncpa %s792, 1
    %794 = vsyncpa [#allocation7], 1
    %795 = vsyncpa [#allocation10], 1
    %s796 = scalar_lea.sflag [#allocation10], 1
    %797 = vsyncpa %s796, 1
    %798 = vsyncpa [#allocation5], 1
    %s799 = scalar_lea.sflag [#allocation5], 1
    %800 = vsyncpa %s799, 1

</llo_original>
